<compile_context>
chip_gen: v6e
topology: v6e:2x2x1
jax: 0.10.0
libtpu: 0.0.40
codegen_flags: <defaults>
</compile_context>

<pallas_src>
import numpy as np
import jax
import jax.numpy as jnp
from jax.experimental import pallas as pl
from jax.experimental.pallas import tpu as pltpu


def _round_up(x, m):
    return ((x + m - 1) // m) * m


class DNRIDynamicVarsDecoderPallas:
    def __init__(self, params, key):
        D = params['input_size']
        H = params['decoder_hidden']
        T = params['num_edge_types']
        self.input_size = D
        self.n_hid = H
        self.num_edge_types = T
        self.skip_first = params['skip_first']
        self.dropout_prob = params['decoder_dropout']  # 0.0 -> identity dropout

        if self.skip_first:
            self.start_idx = 1
            self.norm = float(T) - 1.0
        else:
            self.start_idx = 0
            self.norm = float(T)
        self.t_eff = T - self.start_idx                 # active edge types
        self.t_pad = _round_up(max(self.t_eff, 1), 8)   # lane-padded edge width

        ks = jax.random.split(key, 20)
        s = 0.1

        def w(k, shape):
            return (s * jax.random.normal(k, shape)).astype(jnp.float32)

        # --- original (unpacked) weights, kept for the pure-JAX reference ----
        self.msg_w1 = w(ks[0], (T, 2 * H, H))
        self.msg_b1 = w(ks[1], (T, 1, H))
        self.msg_w2 = w(ks[2], (T, H, H))
        self.msg_b2 = w(ks[3], (T, 1, H))
        self.w_hr = w(ks[4], (H, H))
        self.w_hi = w(ks[5], (H, H))
        self.w_hh = w(ks[6], (H, H))
        self.w_ir = w(ks[7], (D, H)); self.b_ir = w(ks[8], (1, H))
        self.w_ii = w(ks[9], (D, H)); self.b_ii = w(ks[10], (1, H))
        self.w_in = w(ks[11], (D, H)); self.b_in = w(ks[12], (1, H))
        self.w_o1 = w(ks[13], (H, H)); self.b_o1 = w(ks[14], (1, H))
        self.w_o2 = w(ks[15], (H, H)); self.b_o2 = w(ks[16], (1, H))
        self.w_o3 = w(ks[17], (H, D)); self.b_o3 = w(ks[18], (1, D))

        # ------------------------------------------------------------------ #
        # Packed weight slabs (3 lane-dense VMEM inputs instead of 13+).      #
        # ------------------------------------------------------------------ #
        T_eff = self.t_eff
        T_PAD = self.t_pad
        MW = T_eff * H                       # packed message width
        self.mw = MW
        inv_norm = (1.0 / self.norm) if T_eff > 0 else 0.0

        # --- message slab: [ W1(2H rows) | W2(MW) | R(MW) | S(T_PAD) | b1 | b2 ]
        if T_eff > 0:
            w1_np = np.asarray(self.msg_w1)
            b1_np = np.asarray(self.msg_b1)
            w2_np = np.asarray(self.msg_w2)
            b2_np = np.asarray(self.msg_b2)
            w1_packed = np.concatenate(
                [w1_np[t] for t in range(self.start_idx, T)], axis=-1)        # [2H, MW]
            b1_packed = np.concatenate(
                [b1_np[t] for t in range(self.start_idx, T)], axis=-1)        # [1, MW]
            b2_packed = np.concatenate(
                [b2_np[t] for t in range(self.start_idx, T)], axis=-1)        # [1, MW]
            w2_bd = np.zeros((MW, MW), np.float32)                            # block-diag
            for k in range(T_eff):
                w2_bd[k * H:(k + 1) * H, k * H:(k + 1) * H] = w2_np[self.start_idx + k]
            # reduction matrix (type-block sum, 1/norm folded in)
            red = np.zeros((MW, H), np.float32)
            for k in range(T_eff):
                red[k * H:(k + 1) * H, :] = inv_norm * np.eye(H, dtype=np.float32)
            # per-type -> per-H-block broadcast selector
            sel = np.zeros((T_PAD, MW), np.float32)
            for k in range(T_eff):
                sel[k, k * H:(k + 1) * H] = 1.0

            r_w1 = 0
            r_w2 = _round_up(2 * H, 8)
            r_R = r_w2 + _round_up(MW, 8)
            r_S = r_R + _round_up(MW, 8)
            r_b1 = r_S + T_PAD
            r_b2 = r_b1 + 8
            rows = r_b2 + 8
            lw = max(MW, H)
            msg_slab = np.zeros((rows, lw), np.float32)
            msg_slab[r_w1:r_w1 + 2 * H, :MW] = w1_packed
            msg_slab[r_w2:r_w2 + MW, :MW] = w2_bd
            msg_slab[r_R:r_R + MW, :H] = red
            msg_slab[r_S:r_S + T_PAD, :MW] = sel
            msg_slab[r_b1:r_b1 + 1, :MW] = b1_packed
            msg_slab[r_b2:r_b2 + 1, :MW] = b2_packed
            self.msg_slab = jnp.asarray(msg_slab)
            self._msg_offs = (r_w2, r_R, r_S, r_b1, r_b2)
        else:
            # skip_first=True with num_edge_types==1 -> no active edge types;
            # message path is skipped entirely in the kernel.
            self.msg_slab = jnp.zeros((8, 8), jnp.float32)
            self._msg_offs = (0, 0, 0, 0, 0)

        # --- GRU slab: 128-lane-aligned gates [ wx(D rows) | bx | wh(H rows) ]
        gs = _round_up(H, 128)               # gate stride -> r/i/n at 0/gs/2gs
        self._gate_stride = gs
        GW = 3 * gs
        r_bx = _round_up(D, 8)
        r_wh = r_bx + 8
        gru_rows = r_wh + _round_up(H, 8)
        gru_slab = np.zeros((gru_rows, GW), np.float32)
        for g, (wg, bg, hg) in enumerate(
                [(self.w_ir, self.b_ir, self.w_hr),
                 (self.w_ii, self.b_ii, self.w_hi),
                 (self.w_in, self.b_in, self.w_hh)]):
            gru_slab[0:D, g * gs:g * gs + H] = np.asarray(wg)
            gru_slab[r_bx:r_bx + 1, g * gs:g * gs + H] = np.asarray(bg)
            gru_slab[r_wh:r_wh + H, g * gs:g * gs + H] = np.asarray(hg)
        self.gru_slab = jnp.asarray(gru_slab)
        self._gru_offs = (r_bx, r_wh)

        # --- output-MLP slab: [ wo1 | wo2 | wo3 | bo1 | bo2 | bo3 ]
        ow = max(H, D)
        r_o2 = _round_up(H, 8)
        r_o3 = r_o2 + _round_up(H, 8)
        ro_b1 = r_o3 + _round_up(H, 8)
        ro_b2 = ro_b1 + 8
        ro_b3 = ro_b2 + 8
        out_rows = ro_b3 + 8
        out_slab = np.zeros((out_rows, ow), np.float32)
        out_slab[0:H, 0:H] = np.asarray(self.w_o1)
        out_slab[r_o2:r_o2 + H, 0:H] = np.asarray(self.w_o2)
        out_slab[r_o3:r_o3 + H, 0:D] = np.asarray(self.w_o3)
        out_slab[ro_b1:ro_b1 + 1, 0:H] = np.asarray(self.b_o1)
        out_slab[ro_b2:ro_b2 + 1, 0:H] = np.asarray(self.b_o2)
        out_slab[ro_b3:ro_b3 + 1, 0:D] = np.asarray(self.b_o3)
        self.out_slab = jnp.asarray(out_slab)
        self._out_offs = (r_o2, r_o3, ro_b1, ro_b2, ro_b3)

        self._kernel_cache = {}   # (V_PAD, E_PAD) -> compiled pallas_call
        self._graph_cache = {}    # graph signature -> padded incidence/adjacency

    # ------------------------------------------------------------------ kernel
    def _get_kernel(self, V_PAD, E_PAD):
        key = (V_PAD, E_PAD)
        if key in self._kernel_cache:
            return self._kernel_cache[key]

        D, H = self.input_size, self.n_hid
        T_eff, T_PAD, MW = self.t_eff, self.t_pad, self.mw
        gs = self._gate_stride
        r_w2, r_R, r_S, r_b1, r_b2 = self._msg_offs
        r_bx, r_wh = self._gru_offs
        r_o2, r_o3, ro_b1, ro_b2, ro_b3 = self._out_offs

        def kernel(x_ref, h_ref, edges_ref, rs_ref, adj_ref,
                   msg_ref, gru_ref, outw_ref,
                   pred_ref, hout_ref):
            x = x_ref[...]                                   # [V, D]
            h = h_ref[...]                                   # [V, H]

            if T_eff > 0:
                # Gather fused into the first message layer via associativity:
                #   recv_inc @ (h @ W1_recv) + send_inc @ (h @ W1_send) + b1
                hw_r = jnp.dot(h, msg_ref[0:H, 0:MW],
                               preferred_element_type=jnp.float32)           # [V, MW]
                hw_s = jnp.dot(h, msg_ref[H:2 * H, 0:MW],
                               preferred_element_type=jnp.float32)           # [V, MW]
                recv_inc = rs_ref[0:E_PAD, :]
                send_inc = rs_ref[E_PAD:2 * E_PAD, :]
                pre = (jnp.dot(recv_inc, hw_r, preferred_element_type=jnp.float32)
                       + jnp.dot(send_inc, hw_s, preferred_element_type=jnp.float32)
                       + msg_ref[r_b1:r_b1 + 1, 0:MW])                       # [E, MW]
                m = jnp.tanh(pre)
                # dropout_prob == 0.0 -> identity dropout
                m = jnp.tanh(jnp.dot(m, msg_ref[r_w2:r_w2 + MW, 0:MW],
                                     preferred_element_type=jnp.float32)
                             + msg_ref[r_b2:r_b2 + 1, 0:MW])                 # [E, MW]
                # per-type edge probabilities broadcast over H via selector matmul
                mask = jnp.dot(edges_ref[...], msg_ref[r_S:r_S + T_PAD, 0:MW],
                               preferred_element_type=jnp.float32)           # [E, MW]
                m = m * mask
                # type-block reduction + 1/norm, as one matmul against R
                all_msgs = jnp.dot(m, msg_ref[r_R:r_R + MW, 0:H],
                                   preferred_element_type=jnp.float32)       # [E, H]
                # edge -> node aggregation; 1/(num_vars-1) folded into adj host-side
                agg = jnp.dot(adj_ref[...], all_msgs,
                              preferred_element_type=jnp.float32)            # [V, H]
            else:
                agg = jnp.zeros((V_PAD, H), jnp.float32)

            # Fused GRU gate projections, gates 128-lane aligned (offsets 0/gs/2gs)
            inp = jnp.dot(x, gru_ref[0:D, :],
                          preferred_element_type=jnp.float32) + gru_ref[r_bx:r_bx + 1, :]
            hh = jnp.dot(agg, gru_ref[r_wh:r_wh + H, :],
                         preferred_element_type=jnp.float32)
            r = jax.nn.sigmoid(inp[:, 0:H] + hh[:, 0:H])
            i = jax.nn.sigmoid(inp[:, gs:gs + H] + hh[:, gs:gs + H])
            n = jnp.tanh(inp[:, 2 * gs:2 * gs + H] + r * hh[:, 2 * gs:2 * gs + H])
            new_h = (1.0 - i) * n + i * h

            # output MLP (dropout_prob == 0.0 -> identity)
            p = jax.nn.relu(jnp.dot(new_h, outw_ref[0:H, 0:H],
                                    preferred_element_type=jnp.float32)
                            + outw_ref[ro_b1:ro_b1 + 1, 0:H])
            p = jax.nn.relu(jnp.dot(p, outw_ref[r_o2:r_o2 + H, 0:H],
                                    preferred_element_type=jnp.float32)
                            + outw_ref[ro_b2:ro_b2 + 1, 0:H])
            p = jnp.dot(p, outw_ref[r_o3:r_o3 + H, 0:D],
                        preferred_element_type=jnp.float32) + outw_ref[ro_b3:ro_b3 + 1, 0:D]

            pred_ref[...] = x + p
            hout_ref[...] = new_h

        n_inputs = 8
        fn = pl.pallas_call(
            kernel,
            out_shape=(jax.ShapeDtypeStruct((V_PAD, D), jnp.float32),
                       jax.ShapeDtypeStruct((V_PAD, H), jnp.float32)),
            in_specs=[pl.BlockSpec(memory_space=pltpu.MemorySpace.VMEM)] * n_inputs,
            out_specs=(pl.BlockSpec(memory_space=pltpu.MemorySpace.VMEM),
                       pl.BlockSpec(memory_space=pltpu.MemorySpace.VMEM)),
        )
        self._kernel_cache[key] = fn
        return fn

    # ------------------------------------------------------ host graph prep
    def _prepare_graph(self, graph_info, num_vars, V_PAD, E_PAD):
        send_edges, recv_edges, edge2node_inds = graph_info
        send_edges = np.asarray(send_edges)
        recv_edges = np.asarray(recv_edges)
        e2n = np.asarray(edge2node_inds)
        key = (num_vars, V_PAD, E_PAD,
               send_edges.tobytes(), recv_edges.tobytes(), e2n.tobytes())
        if key in self._graph_cache:
            return self._graph_cache[key]

        E = int(send_edges.shape[0])
        # recv incidence stacked on top of send incidence: one [2E_PAD, V_PAD] slab
        rs = np.zeros((2 * E_PAD, V_PAD), np.float32)
        rs[np.arange(E), recv_edges] = 1.0
        rs[E_PAD + np.arange(E), send_edges] = 1.0
        # edge->node adjacency with 1/(num_vars-1) folded in
        adj = np.zeros((V_PAD, E_PAD), np.float32)
        rows = np.repeat(np.arange(num_vars), e2n.shape[1])
        np.add.at(adj, (rows, e2n.reshape(-1)), 1.0)
        adj *= 1.0 / float(num_vars - 1)

        out = (E, jnp.asarray(rs), jnp.asarray(adj))
        self._graph_cache[key] = out
        return out

    # ---------------------------------------------------------------- forward
    def forward(self, inputs, hidden, edges, node_masks, graph_info):
        assert inputs.shape[0] == 1, "reference module semantics assume batch size 1"
        max_num_vars = inputs.shape[1]
        node_inds = np.argwhere(np.asarray(node_masks))[:, -1]
        num_vars = int(node_inds.shape[0])
        D, H = self.input_size, self.n_hid
        T_eff, T_PAD = self.t_eff, self.t_pad

        if num_vars == 0:
            pred_all = jnp.zeros((inputs.shape[0], max_num_vars, inputs.shape[-1]),
                                 jnp.float32)
            return pred_all, hidden

        # static padded sizes (independent of the current node mask -> no recompiles)
        V_PAD = _round_up(max(max_num_vars, 8), 8)
        max_e = max(max_num_vars * (max_num_vars - 1), 8)
        if num_vars > 1:
            max_e = max(max_e, int(np.asarray(graph_info[0]).shape[0]))
        E_PAD = _round_up(max_e, 8)

        current_inputs = inputs[:, node_inds][0]     # [V, D]
        current_hidden = hidden[:, node_inds][0]     # [V, H]
        x_pad = jnp.zeros((V_PAD, D), jnp.float32).at[:num_vars].set(current_inputs)
        h_pad = jnp.zeros((V_PAD, H), jnp.float32).at[:num_vars].set(current_hidden)

        if num_vars > 1 and T_eff > 0:
            E, rs_inc, adj_scaled = self._prepare_graph(graph_info, num_vars,
                                                        V_PAD, E_PAD)
            edges_active = edges[0, :, self.start_idx:]                       # [E, T_eff]
            edges_pad = jnp.zeros((E_PAD, T_PAD), jnp.float32).at[:E, :T_eff].set(
                edges_active)
        else:
            rs_inc = jnp.zeros((2 * E_PAD, V_PAD), jnp.float32)
            adj_scaled = jnp.zeros((V_PAD, E_PAD), jnp.float32)
            edges_pad = jnp.zeros((E_PAD, T_PAD), jnp.float32)

        kernel_fn = self._get_kernel(V_PAD, E_PAD)
        # TODO(synk): input_output_aliases could write new_h back in place; the
        # hidden scatter below is left to XLA for clarity.
        pred_pad, h_new_pad = kernel_fn(
            x_pad, h_pad, edges_pad, rs_inc, adj_scaled,
            self.msg_slab, self.gru_slab, self.out_slab)

        pred = pred_pad[:num_vars]
        new_h = h_new_pad[:num_vars]

        hidden = hidden.at[:, node_inds].set(new_h[None])
        pred_all = jnp.zeros((inputs.shape[0], max_num_vars, inputs.shape[-1]),
                             jnp.float32)
        pred_all = pred_all.at[0, node_inds].set(pred)
        return pred_all, hidden

    # ----------------------------------------------- pure-JAX reference check
    def forward_ref(self, inputs, hidden, edges, node_masks, graph_info):
        max_num_vars = inputs.shape[1]
        node_inds = np.argwhere(np.asarray(node_masks))[:, -1]
        num_vars = int(node_inds.shape[0])
        current_hidden = hidden[:, node_inds][0]
        current_inputs = inputs[:, node_inds][0]
        if num_vars > 1:
            send_edges, recv_edges, edge2node_inds = graph_info
            pre_msg = jnp.concatenate([current_hidden[np.asarray(recv_edges)],
                                       current_hidden[np.asarray(send_edges)]], axis=-1)
            all_msgs = jnp.zeros((pre_msg.shape[0], self.n_hid), jnp.float32)
            for t in range(self.start_idx, self.num_edge_types):
                m = jnp.tanh(pre_msg @ self.msg_w1[t] + self.msg_b1[t])
                m = jnp.tanh(m @ self.msg_w2[t] + self.msg_b2[t])
                m = m * edges[0, :, t:t + 1]
                all_msgs = all_msgs + m / self.norm
            e2n = np.asarray(edge2node_inds)
            incoming = all_msgs[e2n[:, 0]]
            for j in range(1, e2n.shape[1]):
                incoming = incoming + all_msgs[e2n[:, j]]
            agg = incoming / (num_vars - 1)
        else:
            agg = jnp.zeros((num_vars, self.n_hid), jnp.float32)
        inp_r = current_inputs @ self.w_ir + self.b_ir
        inp_i = current_inputs @ self.w_ii + self.b_ii
        inp_n = current_inputs @ self.w_in + self.b_in
        r = jax.nn.sigmoid(inp_r + agg @ self.w_hr)
        i = jax.nn.sigmoid(inp_i + agg @ self.w_hi)
        n = jnp.tanh(inp_n + r * (agg @ self.w_hh))
        new_h = (1 - i) * n + i * current_hidden
        p = jax.nn.relu(new_h @ self.w_o1 + self.b_o1)
        p = jax.nn.relu(p @ self.w_o2 + self.b_o2)
        p = p @ self.w_o3 + self.b_o3
        pred = current_inputs + p
        hidden = hidden.at[:, node_inds].set(new_h[None])
        pred_all = jnp.zeros((inputs.shape[0], max_num_vars, inputs.shape[-1]),
                             jnp.float32)
        pred_all = pred_all.at[0, node_inds].set(pred)
        return pred_all, hidden


def _fully_connected(num_vars):
    send, recv = [], []
    for a in range(num_vars):
        for b in range(num_vars):
            if a != b:
                send.append(a)
                recv.append(b)
    send = np.array(send, np.int32)
    recv = np.array(recv, np.int32)
    e2n = np.stack([np.where(recv == v)[0] for v in range(num_vars)]).astype(np.int32)
    return send, recv, e2n


if __name__ == "__main__":
    params = {
        'input_size': 8,
        'decoder_hidden': 32,
        'num_edge_types': 3,
        'skip_first': True,
        'decoder_dropout': 0.0,   # identity dropout -> deterministic
        'gpu': False,
    }
    max_num_vars = 10
    D, H, T = params['input_size'], params['decoder_hidden'], params['num_edge_types']

    key = jax.random.PRNGKey(0)
    k_mod, k_in, k_hid, k_e1, k_e2 = jax.random.split(key, 5)
    model = DNRIDynamicVarsDecoderPallas(params, k_mod)

    inputs = jax.random.normal(k_in, (1, max_num_vars, D), jnp.float32)
    hidden = jax.random.normal(k_hid, (1, max_num_vars, H), jnp.float32)

    # ---- case 1: 6 active nodes, fully connected local graph ---------------
    node_masks1 = np.array([1, 0, 1, 1, 0, 1, 1, 0, 1, 0], np.int32)
    nv1 = int(node_masks1.sum())
    graph1 = _fully_connected(nv1)
    E1 = graph1[0].shape[0]
    edges1 = jax.nn.softmax(jax.random.normal(k_e1, (1, E1, T)), axis=-1).astype(jnp.float32)

    pred1, hid1 = model.forward(inputs, hidden, edges1, node_masks1, graph1)
    pred1 = jax.block_until_ready(pred1)
    hid1 = jax.block_until_ready(hid1)
    pred1_ref, hid1_ref = model.forward_ref(inputs, hidden, edges1, node_masks1, graph1)
    np.testing.assert_allclose(np.asarray(pred1), np.asarray(pred1_ref),
                               rtol=1e-4, atol=1e-4)
    np.testing.assert_allclose(np.asarray(hid1), np.asarray(hid1_ref),
                               rtol=1e-4, atol=1e-4)

    # ---- case 2: different node mask (4 active) reuses the SAME compiled kernel
    node_masks2 = np.array([1, 0, 0, 1, 0, 0, 1, 0, 0, 1], np.int32)
    nv2 = int(node_masks2.sum())
    graph2 = _fully_connected(nv2)
    E2 = graph2[0].shape[0]
    edges2 = jax.nn.softmax(jax.random.normal(k_e2, (1, E2, T)), axis=-1).astype(jnp.float32)

    pred2, hid2 = model.forward(inputs, hidden, edges2, node_masks2, graph2)
    pred2 = jax.block_until_ready(pred2)
    hid2 = jax.block_until_ready(hid2)
    pred2_ref, hid2_ref = model.forward_ref(inputs, hidden, edges2, node_masks2, graph2)
    np.testing.assert_allclose(np.asarray(pred2), np.asarray(pred2_ref),
                               rtol=1e-4, atol=1e-4)
    np.testing.assert_allclose(np.asarray(hid2), np.asarray(hid2_ref),
                               rtol=1e-4, atol=1e-4)

    assert len(model._kernel_cache) == 1, "expected a single compiled kernel variant"
    print("KERNEL_OK")
</pallas_src>

<mosaic_0001>
module attributes {stable_mosaic.version = 11 : i64} {
  func.func @kernel(%arg0: memref<16x8xf32, #tpu.memory_space<vmem>>, %arg1: memref<16x32xf32, #tpu.memory_space<vmem>>, %arg2: memref<96x8xf32, #tpu.memory_space<vmem>>, %arg3: memref<192x16xf32, #tpu.memory_space<vmem>>, %arg4: memref<16x96xf32, #tpu.memory_space<vmem>>, %arg5: memref<216x64xf32, #tpu.memory_space<vmem>>, %arg6: memref<48x384xf32, #tpu.memory_space<vmem>>, %arg7: memref<120x32xf32, #tpu.memory_space<vmem>>, %arg8: memref<16x8xf32, #tpu.memory_space<vmem>>, %arg9: memref<16x32xf32, #tpu.memory_space<vmem>>) attributes {dimension_semantics = [], scalar_prefetch = 0 : i64, scratch_operands = 0 : i64, tpu.core_type = #tpu.core_type<tc>} {
    %c0 = arith.constant 0 : index
    %c0_0 = arith.constant 0 : index
    %0 = vector.load %arg0[%c0, %c0_0] : memref<16x8xf32, #tpu.memory_space<vmem>>, vector<16x8xf32>
    %c0_1 = arith.constant 0 : index
    %c0_2 = arith.constant 0 : index
    %1 = vector.load %arg1[%c0_1, %c0_2] : memref<16x32xf32, #tpu.memory_space<vmem>>, vector<16x32xf32>
    %c0_3 = arith.constant 0 : index
    %c0_4 = arith.constant 0 : index
    %2 = vector.load %arg5[%c0_3, %c0_4] : memref<216x64xf32, #tpu.memory_space<vmem>>, vector<32x64xf32>
    %cst = arith.constant dense<0.000000e+00> : vector<16x64xf32>
    %3 = tpu.matmul %1, %2, %cst {dimension_numbers = #tpu.dot_dimension_numbers<[1], [0], [0], [1], [0, 0, 1, 1], [], []>} : vector<16x32xf32>, vector<32x64xf32>, vector<16x64xf32> -> vector<16x64xf32>
    %c32 = arith.constant 32 : index
    %c0_5 = arith.constant 0 : index
    %4 = vector.load %arg5[%c32, %c0_5] : memref<216x64xf32, #tpu.memory_space<vmem>>, vector<32x64xf32>
    %cst_6 = arith.constant dense<0.000000e+00> : vector<16x64xf32>
    %5 = tpu.matmul %1, %4, %cst_6 {dimension_numbers = #tpu.dot_dimension_numbers<[1], [0], [0], [1], [0, 0, 1, 1], [], []>} : vector<16x32xf32>, vector<32x64xf32>, vector<16x64xf32> -> vector<16x64xf32>
    %c0_7 = arith.constant 0 : index
    %c0_8 = arith.constant 0 : index
    %6 = vector.load %arg3[%c0_7, %c0_8] : memref<192x16xf32, #tpu.memory_space<vmem>>, vector<96x16xf32>
    %c96 = arith.constant 96 : index
    %c0_9 = arith.constant 0 : index
    %7 = vector.load %arg3[%c96, %c0_9] : memref<192x16xf32, #tpu.memory_space<vmem>>, vector<96x16xf32>
    %cst_10 = arith.constant dense<0.000000e+00> : vector<96x64xf32>
    %8 = tpu.matmul %6, %3, %cst_10 {dimension_numbers = #tpu.dot_dimension_numbers<[1], [0], [0], [1], [0, 0, 1, 1], [], []>} : vector<96x16xf32>, vector<16x64xf32>, vector<96x64xf32> -> vector<96x64xf32>
    %cst_11 = arith.constant dense<0.000000e+00> : vector<96x64xf32>
    %9 = tpu.matmul %7, %5, %cst_11 {dimension_numbers = #tpu.dot_dimension_numbers<[1], [0], [0], [1], [0, 0, 1, 1], [], []>} : vector<96x16xf32>, vector<16x64xf32>, vector<96x64xf32> -> vector<96x64xf32>
    %10 = arith.addf %8, %9 : vector<96x64xf32>
    %c200 = arith.constant 200 : index
    %c0_12 = arith.constant 0 : index
    %11 = vector.load %arg5[%c200, %c0_12] : memref<216x64xf32, #tpu.memory_space<vmem>>, vector<1x64xf32>
    %12 = vector.broadcast %11 : vector<1x64xf32> to vector<96x64xf32>
    %13 = arith.addf %10, %12 : vector<96x64xf32>
    %14 = math.tanh %13 : vector<96x64xf32>
    %c64 = arith.constant 64 : index
    %c0_13 = arith.constant 0 : index
    %15 = vector.load %arg5[%c64, %c0_13] : memref<216x64xf32, #tpu.memory_space<vmem>>, vector<64x64xf32>
    %cst_14 = arith.constant dense<0.000000e+00> : vector<96x64xf32>
    %16 = tpu.matmul %14, %15, %cst_14 {dimension_numbers = #tpu.dot_dimension_numbers<[1], [0], [0], [1], [0, 0, 1, 1], [], []>} : vector<96x64xf32>, vector<64x64xf32>, vector<96x64xf32> -> vector<96x64xf32>
    %c208 = arith.constant 208 : index
    %c0_15 = arith.constant 0 : index
    %17 = vector.load %arg5[%c208, %c0_15] : memref<216x64xf32, #tpu.memory_space<vmem>>, vector<1x64xf32>
    %18 = vector.broadcast %17 : vector<1x64xf32> to vector<96x64xf32>
    %19 = arith.addf %16, %18 : vector<96x64xf32>
    %20 = math.tanh %19 : vector<96x64xf32>
    %c0_16 = arith.constant 0 : index
    %c0_17 = arith.constant 0 : index
    %21 = vector.load %arg2[%c0_16, %c0_17] : memref<96x8xf32, #tpu.memory_space<vmem>>, vector<96x8xf32>
    %c192 = arith.constant 192 : index
    %c0_18 = arith.constant 0 : index
    %22 = vector.load %arg5[%c192, %c0_18] : memref<216x64xf32, #tpu.memory_space<vmem>>, vector<8x64xf32>
    %cst_19 = arith.constant dense<0.000000e+00> : vector<96x64xf32>
    %23 = tpu.matmul %21, %22, %cst_19 {dimension_numbers = #tpu.dot_dimension_numbers<[1], [0], [0], [1], [0, 0, 1, 1], [], []>} : vector<96x8xf32>, vector<8x64xf32>, vector<96x64xf32> -> vector<96x64xf32>
    %24 = arith.mulf %20, %23 : vector<96x64xf32>
    %c128 = arith.constant 128 : index
    %c0_20 = arith.constant 0 : index
    %25 = vector.load %arg5[%c128, %c0_20] : memref<216x64xf32, #tpu.memory_space<vmem>>, vector<64x32xf32>
    %cst_21 = arith.constant dense<0.000000e+00> : vector<96x32xf32>
    %26 = tpu.matmul %24, %25, %cst_21 {dimension_numbers = #tpu.dot_dimension_numbers<[1], [0], [0], [1], [0, 0, 1, 1], [], []>} : vector<96x64xf32>, vector<64x32xf32>, vector<96x32xf32> -> vector<96x32xf32>
    %c0_22 = arith.constant 0 : index
    %c0_23 = arith.constant 0 : index
    %27 = vector.load %arg4[%c0_22, %c0_23] : memref<16x96xf32, #tpu.memory_space<vmem>>, vector<16x96xf32>
    %cst_24 = arith.constant dense<0.000000e+00> : vector<16x32xf32>
    %28 = tpu.matmul %27, %26, %cst_24 {dimension_numbers = #tpu.dot_dimension_numbers<[1], [0], [0], [1], [0, 0, 1, 1], [], []>} : vector<16x96xf32>, vector<96x32xf32>, vector<16x32xf32> -> vector<16x32xf32>
    %c0_25 = arith.constant 0 : index
    %c0_26 = arith.constant 0 : index
    %29 = vector.load %arg6[%c0_25, %c0_26] : memref<48x384xf32, #tpu.memory_space<vmem>>, vector<8x384xf32>
    %cst_27 = arith.constant dense<0.000000e+00> : vector<16x384xf32>
    %30 = tpu.matmul %0, %29, %cst_27 {dimension_numbers = #tpu.dot_dimension_numbers<[1], [0], [0], [1], [0, 0, 1, 1], [], []>} : vector<16x8xf32>, vector<8x384xf32>, vector<16x384xf32> -> vector<16x384xf32>
    %c8 = arith.constant 8 : index
    %c0_28 = arith.constant 0 : index
    %31 = vector.load %arg6[%c8, %c0_28] : memref<48x384xf32, #tpu.memory_space<vmem>>, vector<1x384xf32>
    %32 = vector.broadcast %31 : vector<1x384xf32> to vector<16x384xf32>
    %33 = arith.addf %30, %32 : vector<16x384xf32>
    %c16 = arith.constant 16 : index
    %c0_29 = arith.constant 0 : index
    %34 = vector.load %arg6[%c16, %c0_29] : memref<48x384xf32, #tpu.memory_space<vmem>>, vector<32x384xf32>
    %cst_30 = arith.constant dense<0.000000e+00> : vector<16x384xf32>
    %35 = tpu.matmul %28, %34, %cst_30 {dimension_numbers = #tpu.dot_dimension_numbers<[1], [0], [0], [1], [0, 0, 1, 1], [], []>} : vector<16x32xf32>, vector<32x384xf32>, vector<16x384xf32> -> vector<16x384xf32>
    %36 = vector.extract_strided_slice %33 {offsets = [0, 0], sizes = [16, 32], strides = [1, 1]} : vector<16x384xf32> to vector<16x32xf32>
    %37 = vector.extract_strided_slice %35 {offsets = [0, 0], sizes = [16, 32], strides = [1, 1]} : vector<16x384xf32> to vector<16x32xf32>
    %38 = arith.addf %36, %37 : vector<16x32xf32>
    %39 = arith.negf %38 : vector<16x32xf32>
    %40 = math.exp %39 : vector<16x32xf32>
    %cst_31 = arith.constant 1.000000e+00 : f32
    %41 = vector.broadcast %cst_31 : f32 to vector<16x32xf32>
    %42 = arith.addf %41, %40 : vector<16x32xf32>
    %43 = arith.divf %41, %42 : vector<16x32xf32>
    %44 = vector.extract_strided_slice %33 {offsets = [0, 128], sizes = [16, 32], strides = [1, 1]} : vector<16x384xf32> to vector<16x32xf32>
    %45 = vector.extract_strided_slice %35 {offsets = [0, 128], sizes = [16, 32], strides = [1, 1]} : vector<16x384xf32> to vector<16x32xf32>
    %46 = arith.addf %44, %45 : vector<16x32xf32>
    %47 = arith.negf %46 : vector<16x32xf32>
    %48 = math.exp %47 : vector<16x32xf32>
    %cst_32 = arith.constant 1.000000e+00 : f32
    %49 = vector.broadcast %cst_32 : f32 to vector<16x32xf32>
    %50 = arith.addf %49, %48 : vector<16x32xf32>
    %51 = arith.divf %49, %50 : vector<16x32xf32>
    %52 = vector.extract_strided_slice %33 {offsets = [0, 256], sizes = [16, 32], strides = [1, 1]} : vector<16x384xf32> to vector<16x32xf32>
    %53 = vector.extract_strided_slice %35 {offsets = [0, 256], sizes = [16, 32], strides = [1, 1]} : vector<16x384xf32> to vector<16x32xf32>
    %54 = arith.mulf %43, %53 : vector<16x32xf32>
    %55 = arith.addf %52, %54 : vector<16x32xf32>
    %56 = math.tanh %55 : vector<16x32xf32>
    %cst_33 = arith.constant 1.000000e+00 : f32
    %57 = vector.broadcast %cst_33 : f32 to vector<16x32xf32>
    %58 = arith.subf %57, %51 : vector<16x32xf32>
    %59 = arith.mulf %58, %56 : vector<16x32xf32>
    %60 = arith.mulf %51, %1 : vector<16x32xf32>
    %61 = arith.addf %59, %60 : vector<16x32xf32>
    %c0_34 = arith.constant 0 : index
    %c0_35 = arith.constant 0 : index
    %62 = vector.load %arg7[%c0_34, %c0_35] : memref<120x32xf32, #tpu.memory_space<vmem>>, vector<32x32xf32>
    %cst_36 = arith.constant dense<0.000000e+00> : vector<16x32xf32>
    %63 = tpu.matmul %61, %62, %cst_36 {dimension_numbers = #tpu.dot_dimension_numbers<[1], [0], [0], [1], [0, 0, 1, 1], [], []>} : vector<16x32xf32>, vector<32x32xf32>, vector<16x32xf32> -> vector<16x32xf32>
    %c96_37 = arith.constant 96 : index
    %c0_38 = arith.constant 0 : index
    %64 = vector.load %arg7[%c96_37, %c0_38] : memref<120x32xf32, #tpu.memory_space<vmem>>, vector<1x32xf32>
    %65 = vector.broadcast %64 : vector<1x32xf32> to vector<16x32xf32>
    %66 = arith.addf %63, %65 : vector<16x32xf32>
    %cst_39 = arith.constant 0.000000e+00 : f32
    %67 = vector.broadcast %cst_39 : f32 to vector<16x32xf32>
    %68 = arith.maximumf %66, %67 : vector<16x32xf32>
    %c32_40 = arith.constant 32 : index
    %c0_41 = arith.constant 0 : index
    %69 = vector.load %arg7[%c32_40, %c0_41] : memref<120x32xf32, #tpu.memory_space<vmem>>, vector<32x32xf32>
    %cst_42 = arith.constant dense<0.000000e+00> : vector<16x32xf32>
    %70 = tpu.matmul %68, %69, %cst_42 {dimension_numbers = #tpu.dot_dimension_numbers<[1], [0], [0], [1], [0, 0, 1, 1], [], []>} : vector<16x32xf32>, vector<32x32xf32>, vector<16x32xf32> -> vector<16x32xf32>
    %c104 = arith.constant 104 : index
    %c0_43 = arith.constant 0 : index
    %71 = vector.load %arg7[%c104, %c0_43] : memref<120x32xf32, #tpu.memory_space<vmem>>, vector<1x32xf32>
    %72 = vector.broadcast %71 : vector<1x32xf32> to vector<16x32xf32>
    %73 = arith.addf %70, %72 : vector<16x32xf32>
    %cst_44 = arith.constant 0.000000e+00 : f32
    %74 = vector.broadcast %cst_44 : f32 to vector<16x32xf32>
    %75 = arith.maximumf %73, %74 : vector<16x32xf32>
    %c64_45 = arith.constant 64 : index
    %c0_46 = arith.constant 0 : index
    %76 = vector.load %arg7[%c64_45, %c0_46] : memref<120x32xf32, #tpu.memory_space<vmem>>, vector<32x8xf32>
    %cst_47 = arith.constant dense<0.000000e+00> : vector<16x8xf32>
    %77 = tpu.matmul %75, %76, %cst_47 {dimension_numbers = #tpu.dot_dimension_numbers<[1], [0], [0], [1], [0, 0, 1, 1], [], []>} : vector<16x32xf32>, vector<32x8xf32>, vector<16x8xf32> -> vector<16x8xf32>
    %c112 = arith.constant 112 : index
    %c0_48 = arith.constant 0 : index
    %78 = vector.load %arg7[%c112, %c0_48] : memref<120x32xf32, #tpu.memory_space<vmem>>, vector<1x8xf32>
    %79 = vector.broadcast %78 : vector<1x8xf32> to vector<16x8xf32>
    %80 = arith.addf %77, %79 : vector<16x8xf32>
    %81 = arith.addf %0, %80 : vector<16x8xf32>
    %c0_49 = arith.constant 0 : index
    %c0_50 = arith.constant 0 : index
    %82 = vector.load %arg8[%c0_49, %c0_50] : memref<16x8xf32, #tpu.memory_space<vmem>>, vector<16x8xf32>
    tpu.vector_store %arg8[%c0_49, %c0_50], %81 {strides = array<i32>} : memref<16x8xf32, #tpu.memory_space<vmem>>, vector<16x8xf32>,
    %c0_51 = arith.constant 0 : index
    %c0_52 = arith.constant 0 : index
    %83 = vector.load %arg9[%c0_51, %c0_52] : memref<16x32xf32, #tpu.memory_space<vmem>>, vector<16x32xf32>
    tpu.vector_store %arg9[%c0_51, %c0_52], %61 {strides = array<i32>} : memref<16x32xf32, #tpu.memory_space<vmem>>, vector<16x32xf32>,
    return
  }
}

</mosaic_0001>

<llo_original>
// kernel: tpu_custom_call.1
$region0: #{tpu_custom_call.1}
  #allocation0 [shape = 'u32[]', space=smem, size = 0x4, offset = 0x4, fixed_abs, tag = 'smem constant byte address 0x4 - core index']
  #allocation1 [shape = 'u32[144,128]{1,0:T(1,128)}', space=vmem, size = 0x12000, scoped, tag = 'internal scratch']
  %s0 = inlined_call_operand.vmem [shape: f32[16,8], index: 0, kind: input, shape index: {}]
  %s1 = inlined_call_operand.vmem [shape: f32[16,32], index: 1, kind: input, shape index: {}]
  %s2 = inlined_call_operand.vmem [shape: f32[96,8], index: 2, kind: input, shape index: {}]
  %s3 = inlined_call_operand.vmem [shape: f32[192,16], index: 3, kind: input, shape index: {}]
  %s4 = inlined_call_operand.vmem [shape: f32[16,96], index: 4, kind: input, shape index: {}]
  %s5 = inlined_call_operand.vmem [shape: f32[216,64], index: 5, kind: input, shape index: {}]
  %s6 = inlined_call_operand.vmem [shape: f32[48,384], index: 6, kind: input, shape index: {}]
  %s7 = inlined_call_operand.vmem [shape: f32[120,32], index: 7, kind: input, shape index: {}]
  %s8 = inlined_call_operand.vmem [shape: f32[16,8], index: 8, kind: output, shape index: {0}]
  %s9 = inlined_call_operand.hbm [shape: f32[16,32], index: 9, kind: output, shape index: {1}]
  %10 = xla_tuple %s8, %s9
  %s11 = sld [smem:[#allocation0]]
  $region50: #{tpu_custom_call.1} parent=0
    _
  %s13 = ssub.s32 1, %s11
  %s14 = scalar_select 0, %s13, %s11
  $region1: #{tpu_custom_call.1} parent=0
    #allocation2 [shape = 'u8[8192]{0}', space=vmem, size = 0x2000, scoped, tag = 'output window, operand 1, single buffered']
    #allocation3 [shape = 's32[1]{0}', space=sflag, size = 0x4, scoped, tag = 'scoped memory for tpu_custom_call.1']
    %15 = vsyncpa [#allocation3], 0
    // Predicated region
    $region2: #{tpu_custom_call.1} parent=1 // pred_check
      _
    $region3: #{tpu_custom_call.1} parent=1 // pred_check_branch
      %17 = sbr.rel (0) target = $region5
    $region4: #{tpu_custom_call.1} parent=1 // pred_region
      _
    $region5: #{tpu_custom_call.1} parent=1 // pred_fallthru
      _
    // Predicated region
    $region6: #{tpu_custom_call.1} parent=1 // pred_check
      _
    $region7: #{tpu_custom_call.1} parent=1 // pred_check_branch
      %19 = sbr.rel (0) target = $region9
    $region8: #{tpu_custom_call.1} parent=1 // pred_region
      _
    $region9: #{tpu_custom_call.1} parent=1 // pred_fallthru
      _
    // Predicated region
    $region10: #{tpu_custom_call.1} parent=1 // pred_check
      _
    $region11: #{tpu_custom_call.1} parent=1 // pred_check_branch
      %21 = sbr.rel (0) target = $region13
    $region12: #{tpu_custom_call.1} parent=1 // pred_region
      _
    $region13: #{tpu_custom_call.1} parent=1 // pred_fallthru
      _
    // Predicated region
    $region14: #{tpu_custom_call.1} parent=1 // pred_check
      _
    $region15: #{tpu_custom_call.1} parent=1 // pred_check_branch
      %23 = sbr.rel (0) target = $region17
    $region16: #{tpu_custom_call.1} parent=1 // pred_region
      _
    $region17: #{tpu_custom_call.1} parent=1 // pred_fallthru
      _
    // Predicated region
    $region18: #{tpu_custom_call.1} parent=1 // pred_check
      _
    $region19: #{tpu_custom_call.1} parent=1 // pred_check_branch
      %25 = sbr.rel (0) target = $region21
    $region20: #{tpu_custom_call.1} parent=1 // pred_region
      _
    $region21: #{tpu_custom_call.1} parent=1 // pred_fallthru
      _
    // Predicated region
    $region22: #{tpu_custom_call.1} parent=1 // pred_check
      _
    $region23: #{tpu_custom_call.1} parent=1 // pred_check_branch
      %27 = sbr.rel (0) target = $region25
    $region24: #{tpu_custom_call.1} parent=1 // pred_region
      _
    $region25: #{tpu_custom_call.1} parent=1 // pred_fallthru
      _
    // Predicated region
    $region26: #{tpu_custom_call.1} parent=1 // pred_check
      _
    $region27: #{tpu_custom_call.1} parent=1 // pred_check_branch
      %29 = sbr.rel (0) target = $region29
    $region28: #{tpu_custom_call.1} parent=1 // pred_region
      _
    $region29: #{tpu_custom_call.1} parent=1 // pred_fallthru
      _
    // Predicated region
    $region30: #{tpu_custom_call.1} parent=1 // pred_check
      _
    $region31: #{tpu_custom_call.1} parent=1 // pred_check_branch
      %31 = sbr.rel (0) target = $region33
    $region32: #{tpu_custom_call.1} parent=1 // pred_region
      _
    $region33: #{tpu_custom_call.1} parent=1 // pred_fallthru
      _
    %v32 = vld [vmem:[%s0] sm:$0xff]
    %v33 = vld [vmem:[%s0 + $0x8] sm:$0xff]
    %v34 = vld [vmem:[%s1] sm:$0xff]
    %v35 = vld [vmem:[%s1 + $0x8] sm:$0xff]
    %v36 = vld [vmem:[%s5] sm:$0xff]
    %v37 = vld [vmem:[%s5 + $0x8] sm:$0xff]
    %v38 = vld [vmem:[%s5 + $0x10] sm:$0xff]
    %v39 = vld [vmem:[%s5 + $0x18] sm:$0xff]
    %vm40 = vcmask 261120
    %v42 = vsel %vm40, %v34, 0
    %v45 = vsel %vm40, %v35, 0
    %47 = vmatprep.subr.mxu0 0.0
    %48 = vmatpush1.msra.mxu0 0.0
    %49 = vmatprep.subr.mxu0 0.0
    %50 = vmatpush1.msra.mxu0 0.0
    %51 = vmatprep.subr.mxu0 0.0
    %52 = vmatpush1.msra.mxu0 0.0
    %53 = vmatprep.subr.mxu0 0.0
    %54 = vmatpush1.msra.mxu0 0.0
    %55 = vmatprep.subr.mxu0 0.0
    %56 = vmatpush1.msra.mxu0 0.0
    %57 = vmatprep.subr.mxu0 0.0
    %58 = vmatpush1.msra.mxu0 0.0
    %59 = vmatprep.subr.mxu0 0.0
    %60 = vmatpush1.msra.mxu0 0.0
    %61 = vmatprep.subr.mxu0 0.0
    %62 = vmatpush1.msra.mxu0 0.0
    %63 = vmatprep.subr.mxu0 0.0
    %64 = vmatpush1.msra.mxu0 0.0
    %65 = vmatprep.subr.mxu0 0.0
    %66 = vmatpush1.msra.mxu0 0.0
    %67 = vmatprep.subr.mxu0 0.0
    %68 = vmatpush1.msra.mxu0 0.0
    %69 = vmatprep.subr.mxu0 0.0
    %70 = vmatpush1.msra.mxu0 0.0
    %71 = vmatprep.subr.mxu0 0.0
    %72 = vmatpush1.msra.mxu0 %v39
    %73 = vmatprep.subr.mxu0 0.0
    %74 = vmatpush1.msra.mxu0 %v38
    %75 = vmatprep.subr.mxu0 0.0
    %76 = vmatpush1.msra.mxu0 %v37
    %77 = vmatprep.subr.mxu0 0.0
    %78 = vmatpush1.msra.mxu0 %v36
    %79 = vmatprep.subr.mxu0 0.0
    %80 = vmatpush2.msra.mxu0 0.0
    %81 = vmatprep.subr.mxu0 0.0
    %82 = vmatpush2.msra.mxu0 0.0
    %83 = vmatprep.subr.mxu0 0.0
    %84 = vmatpush2.msra.mxu0 0.0
    %85 = vmatprep.subr.mxu0 0.0
    %86 = vmatpush2.msra.mxu0 0.0
    %87 = vmatprep.subr.mxu0 0.0
    %88 = vmatpush2.msra.mxu0 0.0
    %89 = vmatprep.subr.mxu0 0.0
    %90 = vmatpush2.msra.mxu0 0.0
    %91 = vmatprep.subr.mxu0 0.0
    %92 = vmatpush2.msra.mxu0 0.0
    %93 = vmatprep.subr.mxu0 0.0
    %94 = vmatpush2.msra.mxu0 0.0
    %95 = vmatprep.subr.mxu0 0.0
    %96 = vmatpush2.msra.mxu0 0.0
    %97 = vmatprep.subr.mxu0 0.0
    %98 = vmatpush2.msra.mxu0 0.0
    %99 = vmatprep.subr.mxu0 0.0
    %100 = vmatpush2.msra.mxu0 0.0
    %101 = vmatprep.subr.mxu0 0.0
    %102 = vmatpush2.msra.mxu0 0.0
    %103 = vmatprep.subr.mxu0 0.0
    %104 = vmatpush2.msra.mxu0 0.0
    %105 = vmatprep.subr.mxu0 0.0
    %106 = vmatpush2.msra.mxu0 0.0
    %107 = vmatprep.subr.mxu0 0.0
    %108 = vmatpush2.msra.mxu0 0.0
    %109 = vmatprep.subr.mxu0 0.0
    %110 = vmatpush2.msra.mxu0 0.0
    %111 = vmatprep.mubr.f32.mxu0 0.0
    %112 = vmatmul.mubr.f32.gmra.mxu0 %v42
    %v113 = vpop.f32.mrf.mxu0
    %v114 = vadd.f32 0.0, %v113
    %v115 = vpop.f32.mrf.mxu0
    %116 = vmatprep.mubr.f32.mxu0 0.0
    %117 = vmatmul.mubr.f32.gmra.mxu0 %v45
    %v118 = vpop.f32.mrf.mxu0
    %v119 = vadd.f32 0.0, %v118
    %v120 = vpop.f32.mrf.mxu0
    %121 = vdwg.mxu0
    %v122 = vld [vmem:[%s5 + $0x20] sm:$0xff]
    %v123 = vld [vmem:[%s5 + $0x28] sm:$0xff]
    %v124 = vld [vmem:[%s5 + $0x30] sm:$0xff]
    %v125 = vld [vmem:[%s5 + $0x38] sm:$0xff]
    %126 = vmatprep.subr.mxu0 0.0
    %127 = vmatpush1.msra.mxu0 0.0
    %128 = vmatprep.subr.mxu0 0.0
    %129 = vmatpush1.msra.mxu0 0.0
    %130 = vmatprep.subr.mxu0 0.0
    %131 = vmatpush1.msra.mxu0 0.0
    %132 = vmatprep.subr.mxu0 0.0
    %133 = vmatpush1.msra.mxu0 0.0
    %134 = vmatprep.subr.mxu0 0.0
    %135 = vmatpush1.msra.mxu0 0.0
    %136 = vmatprep.subr.mxu0 0.0
    %137 = vmatpush1.msra.mxu0 0.0
    %138 = vmatprep.subr.mxu0 0.0
    %139 = vmatpush1.msra.mxu0 0.0
    %140 = vmatprep.subr.mxu0 0.0
    %141 = vmatpush1.msra.mxu0 0.0
    %142 = vmatprep.subr.mxu0 0.0
    %143 = vmatpush1.msra.mxu0 0.0
    %144 = vmatprep.subr.mxu0 0.0
    %145 = vmatpush1.msra.mxu0 0.0
    %146 = vmatprep.subr.mxu0 0.0
    %147 = vmatpush1.msra.mxu0 0.0
    %148 = vmatprep.subr.mxu0 0.0
    %149 = vmatpush1.msra.mxu0 0.0
    %150 = vmatprep.subr.mxu0 0.0
    %151 = vmatpush1.msra.mxu0 %v125
    %152 = vmatprep.subr.mxu0 0.0
    %153 = vmatpush1.msra.mxu0 %v124
    %154 = vmatprep.subr.mxu0 0.0
    %155 = vmatpush1.msra.mxu0 %v123
    %156 = vmatprep.subr.mxu0 0.0
    %157 = vmatpush1.msra.mxu0 %v122
    %158 = vmatprep.subr.mxu0 0.0
    %159 = vmatpush2.msra.mxu0 0.0
    %160 = vmatprep.subr.mxu0 0.0
    %161 = vmatpush2.msra.mxu0 0.0
    %162 = vmatprep.subr.mxu0 0.0
    %163 = vmatpush2.msra.mxu0 0.0
    %164 = vmatprep.subr.mxu0 0.0
    %165 = vmatpush2.msra.mxu0 0.0
    %166 = vmatprep.subr.mxu0 0.0
    %167 = vmatpush2.msra.mxu0 0.0
    %168 = vmatprep.subr.mxu0 0.0
    %169 = vmatpush2.msra.mxu0 0.0
    %170 = vmatprep.subr.mxu0 0.0
    %171 = vmatpush2.msra.mxu0 0.0
    %172 = vmatprep.subr.mxu0 0.0
    %173 = vmatpush2.msra.mxu0 0.0
    %174 = vmatprep.subr.mxu0 0.0
    %175 = vmatpush2.msra.mxu0 0.0
    %176 = vmatprep.subr.mxu0 0.0
    %177 = vmatpush2.msra.mxu0 0.0
    %178 = vmatprep.subr.mxu0 0.0
    %179 = vmatpush2.msra.mxu0 0.0
    %180 = vmatprep.subr.mxu0 0.0
    %181 = vmatpush2.msra.mxu0 0.0
    %182 = vmatprep.subr.mxu0 0.0
    %183 = vmatpush2.msra.mxu0 0.0
    %184 = vmatprep.subr.mxu0 0.0
    %185 = vmatpush2.msra.mxu0 0.0
    %186 = vmatprep.subr.mxu0 0.0
    %187 = vmatpush2.msra.mxu0 0.0
    %188 = vmatprep.subr.mxu0 0.0
    %189 = vmatpush2.msra.mxu0 0.0
    %190 = vmatprep.mubr.f32.mxu0 0.0
    %191 = vmatmul.mubr.f32.gmra.mxu0 %v42
    %v192 = vpop.f32.mrf.mxu0
    %v193 = vadd.f32 0.0, %v192
    %v194 = vpop.f32.mrf.mxu0
    %195 = vmatprep.mubr.f32.mxu0 0.0
    %196 = vmatmul.mubr.f32.gmra.mxu0 %v45
    %v197 = vpop.f32.mrf.mxu0
    %v198 = vadd.f32 0.0, %v197
    %v199 = vpop.f32.mrf.mxu0
    %200 = vdwg.mxu0
    %v201 = vld [vmem:[%s3] sm:$0xff]
    %v202 = vld [vmem:[%s3 + $0x8] sm:$0xff]
    %v203 = vld [vmem:[%s3 + $0x10] sm:$0xff]
    %v204 = vld [vmem:[%s3 + $0x18] sm:$0xff]
    %v205 = vld [vmem:[%s3 + $0x20] sm:$0xff]
    %v206 = vld [vmem:[%s3 + $0x28] sm:$0xff]
    %v207 = vld [vmem:[%s3 + $0x30] sm:$0xff]
    %v208 = vld [vmem:[%s3 + $0x38] sm:$0xff]
    %v209 = vld [vmem:[%s3 + $0x40] sm:$0xff]
    %v210 = vld [vmem:[%s3 + $0x48] sm:$0xff]
    %v211 = vld [vmem:[%s3 + $0x50] sm:$0xff]
    %v212 = vld [vmem:[%s3 + $0x58] sm:$0xff]
    %v213 = vld [vmem:[%s3 + $0x60] sm:$0xff]
    %v214 = vld [vmem:[%s3 + $0x68] sm:$0xff]
    %v215 = vld [vmem:[%s3 + $0x70] sm:$0xff]
    %v216 = vld [vmem:[%s3 + $0x78] sm:$0xff]
    %v217 = vld [vmem:[%s3 + $0x80] sm:$0xff]
    %v218 = vld [vmem:[%s3 + $0x88] sm:$0xff]
    %v219 = vld [vmem:[%s3 + $0x90] sm:$0xff]
    %v220 = vld [vmem:[%s3 + $0x98] sm:$0xff]
    %v221 = vld [vmem:[%s3 + $0xa0] sm:$0xff]
    %v222 = vld [vmem:[%s3 + $0xa8] sm:$0xff]
    %v223 = vld [vmem:[%s3 + $0xb0] sm:$0xff]
    %v224 = vld [vmem:[%s3 + $0xb8] sm:$0xff]
    %vm225 = vcmask 130048
    %v227 = vsel %vm225, %v213, 0
    %v230 = vsel %vm225, %v214, 0
    %v233 = vsel %vm225, %v215, 0
    %v236 = vsel %vm225, %v216, 0
    %v239 = vsel %vm225, %v217, 0
    %v242 = vsel %vm225, %v218, 0
    %v245 = vsel %vm225, %v219, 0
    %v248 = vsel %vm225, %v220, 0
    %v251 = vsel %vm225, %v221, 0
    %v254 = vsel %vm225, %v222, 0
    %v257 = vsel %vm225, %v223, 0
    %v260 = vsel %vm225, %v224, 0
    %262 = vmatprep.subr.mxu0 0.0
    %263 = vmatpush1.msra.mxu0 0.0
    %264 = vmatprep.subr.mxu0 0.0
    %265 = vmatpush1.msra.mxu0 0.0
    %266 = vmatprep.subr.mxu0 0.0
    %267 = vmatpush1.msra.mxu0 0.0
    %268 = vmatprep.subr.mxu0 0.0
    %269 = vmatpush1.msra.mxu0 0.0
    %270 = vmatprep.subr.mxu0 0.0
    %271 = vmatpush1.msra.mxu0 0.0
    %272 = vmatprep.subr.mxu0 0.0
    %273 = vmatpush1.msra.mxu0 0.0
    %274 = vmatprep.subr.mxu0 0.0
    %275 = vmatpush1.msra.mxu0 0.0
    %276 = vmatprep.subr.mxu0 0.0
    %277 = vmatpush1.msra.mxu0 0.0
    %278 = vmatprep.subr.mxu0 0.0
    %279 = vmatpush1.msra.mxu0 0.0
    %280 = vmatprep.subr.mxu0 0.0
    %281 = vmatpush1.msra.mxu0 0.0
    %282 = vmatprep.subr.mxu0 0.0
    %283 = vmatpush1.msra.mxu0 0.0
    %284 = vmatprep.subr.mxu0 0.0
    %285 = vmatpush1.msra.mxu0 0.0
    %286 = vmatprep.subr.mxu0 0.0
    %287 = vmatpush1.msra.mxu0 0.0
    %288 = vmatprep.subr.mxu0 0.0
    %289 = vmatpush1.msra.mxu0 0.0
    %290 = vmatprep.subr.mxu0 0.0
    %291 = vmatpush1.msra.mxu0 %v198
    %292 = vmatprep.subr.mxu0 0.0
    %293 = vmatpush1.msra.mxu0 %v193
    %294 = vmatprep.subr.mxu0 0.0
    %295 = vmatpush2.msra.mxu0 0.0
    %296 = vmatprep.subr.mxu0 0.0
    %297 = vmatpush2.msra.mxu0 0.0
    %298 = vmatprep.subr.mxu0 0.0
    %299 = vmatpush2.msra.mxu0 0.0
    %300 = vmatprep.subr.mxu0 0.0
    %301 = vmatpush2.msra.mxu0 0.0
    %302 = vmatprep.subr.mxu0 0.0
    %303 = vmatpush2.msra.mxu0 0.0
    %304 = vmatprep.subr.mxu0 0.0
    %305 = vmatpush2.msra.mxu0 0.0
    %306 = vmatprep.subr.mxu0 0.0
    %307 = vmatpush2.msra.mxu0 0.0
    %308 = vmatprep.subr.mxu0 0.0
    %309 = vmatpush2.msra.mxu0 0.0
    %310 = vmatprep.subr.mxu0 0.0
    %311 = vmatpush2.msra.mxu0 0.0
    %312 = vmatprep.subr.mxu0 0.0
    %313 = vmatpush2.msra.mxu0 0.0
    %314 = vmatprep.subr.mxu0 0.0
    %315 = vmatpush2.msra.mxu0 0.0
    %316 = vmatprep.subr.mxu0 0.0
    %317 = vmatpush2.msra.mxu0 0.0
    %318 = vmatprep.subr.mxu0 0.0
    %319 = vmatpush2.msra.mxu0 0.0
    %320 = vmatprep.subr.mxu0 0.0
    %321 = vmatpush2.msra.mxu0 0.0
    %322 = vmatprep.subr.mxu0 0.0
    %323 = vmatpush2.msra.mxu0 0.0
    %324 = vmatprep.subr.mxu0 0.0
    %325 = vmatpush2.msra.mxu0 0.0
    %326 = vmatprep.mubr.f32.mxu0 0.0
    %327 = vmatmul.mubr.f32.gmra.mxu0 %v227
    %v328 = vpop.f32.mrf.mxu0
    %v329 = vadd.f32 0.0, %v328
    %v330 = vpop.f32.mrf.mxu0
    %331 = vmatprep.mubr.f32.mxu0 0.0
    %332 = vmatmul.mubr.f32.gmra.mxu0 %v230
    %v333 = vpop.f32.mrf.mxu0
    %v334 = vadd.f32 0.0, %v333
    %v335 = vpop.f32.mrf.mxu0
    %336 = vmatprep.mubr.f32.mxu0 0.0
    %337 = vmatmul.mubr.f32.gmra.mxu0 %v233
    %v338 = vpop.f32.mrf.mxu0
    %v339 = vadd.f32 0.0, %v338
    %v340 = vpop.f32.mrf.mxu0
    %341 = vmatprep.mubr.f32.mxu0 0.0
    %342 = vmatmul.mubr.f32.gmra.mxu0 %v236
    %v343 = vpop.f32.mrf.mxu0
    %v344 = vadd.f32 0.0, %v343
    %v345 = vpop.f32.mrf.mxu0
    %346 = vmatprep.mubr.f32.mxu0 0.0
    %347 = vmatmul.mubr.f32.gmra.mxu0 %v239
    %v348 = vpop.f32.mrf.mxu0
    %v349 = vadd.f32 0.0, %v348
    %v350 = vpop.f32.mrf.mxu0
    %351 = vmatprep.mubr.f32.mxu0 0.0
    %352 = vmatmul.mubr.f32.gmra.mxu0 %v242
    %v353 = vpop.f32.mrf.mxu0
    %v354 = vadd.f32 0.0, %v353
    %v355 = vpop.f32.mrf.mxu0
    %356 = vmatprep.mubr.f32.mxu0 0.0
    %357 = vmatmul.mubr.f32.gmra.mxu0 %v245
    %v358 = vpop.f32.mrf.mxu0
    %v359 = vadd.f32 0.0, %v358
    %v360 = vpop.f32.mrf.mxu0
    %361 = vmatprep.mubr.f32.mxu0 0.0
    %362 = vmatmul.mubr.f32.gmra.mxu0 %v248
    %v363 = vpop.f32.mrf.mxu0
    %v364 = vadd.f32 0.0, %v363
    %v365 = vpop.f32.mrf.mxu0
    %366 = vmatprep.mubr.f32.mxu0 0.0
    %367 = vmatmul.mubr.f32.gmra.mxu0 %v251
    %v368 = vpop.f32.mrf.mxu0
    %v369 = vadd.f32 0.0, %v368
    %v370 = vpop.f32.mrf.mxu0
    %371 = vmatprep.mubr.f32.mxu0 0.0
    %372 = vmatmul.mubr.f32.gmra.mxu0 %v254
    %v373 = vpop.f32.mrf.mxu0
    %v374 = vadd.f32 0.0, %v373
    %v375 = vpop.f32.mrf.mxu0
    %376 = vmatprep.mubr.f32.mxu0 0.0
    %377 = vmatmul.mubr.f32.gmra.mxu0 %v257
    %v378 = vpop.f32.mrf.mxu0
    %v379 = vadd.f32 0.0, %v378
    %v380 = vpop.f32.mrf.mxu0
    %381 = vmatprep.mubr.f32.mxu0 0.0
    %382 = vmatmul.mubr.f32.gmra.mxu0 %v260
    %v383 = vpop.f32.mrf.mxu0
    %v384 = vadd.f32 0.0, %v383
    %v385 = vpop.f32.mrf.mxu0
    %386 = vdwg.mxu0
    %v388 = vsel %vm225, %v201, 0
    %v391 = vsel %vm225, %v202, 0
    %v394 = vsel %vm225, %v203, 0
    %v397 = vsel %vm225, %v204, 0
    %v400 = vsel %vm225, %v205, 0
    %v403 = vsel %vm225, %v206, 0
    %v406 = vsel %vm225, %v207, 0
    %v409 = vsel %vm225, %v208, 0
    %v412 = vsel %vm225, %v209, 0
    %v415 = vsel %vm225, %v210, 0
    %v418 = vsel %vm225, %v211, 0
    %v421 = vsel %vm225, %v212, 0
    %423 = vmatprep.subr.mxu0 0.0
    %424 = vmatpush1.msra.mxu0 0.0
    %425 = vmatprep.subr.mxu0 0.0
    %426 = vmatpush1.msra.mxu0 0.0
    %427 = vmatprep.subr.mxu0 0.0
    %428 = vmatpush1.msra.mxu0 0.0
    %429 = vmatprep.subr.mxu0 0.0
    %430 = vmatpush1.msra.mxu0 0.0
    %431 = vmatprep.subr.mxu0 0.0
    %432 = vmatpush1.msra.mxu0 0.0
    %433 = vmatprep.subr.mxu0 0.0
    %434 = vmatpush1.msra.mxu0 0.0
    %435 = vmatprep.subr.mxu0 0.0
    %436 = vmatpush1.msra.mxu0 0.0
    %437 = vmatprep.subr.mxu0 0.0
    %438 = vmatpush1.msra.mxu0 0.0
    %439 = vmatprep.subr.mxu0 0.0
    %440 = vmatpush1.msra.mxu0 0.0
    %441 = vmatprep.subr.mxu0 0.0
    %442 = vmatpush1.msra.mxu0 0.0
    %443 = vmatprep.subr.mxu0 0.0
    %444 = vmatpush1.msra.mxu0 0.0
    %445 = vmatprep.subr.mxu0 0.0
    %446 = vmatpush1.msra.mxu0 0.0
    %447 = vmatprep.subr.mxu0 0.0
    %448 = vmatpush1.msra.mxu0 0.0
    %449 = vmatprep.subr.mxu0 0.0
    %450 = vmatpush1.msra.mxu0 0.0
    %451 = vmatprep.subr.mxu0 0.0
    %452 = vmatpush1.msra.mxu0 %v119
    %453 = vmatprep.subr.mxu0 0.0
    %454 = vmatpush1.msra.mxu0 %v114
    %455 = vmatprep.subr.mxu0 0.0
    %456 = vmatpush2.msra.mxu0 0.0
    %457 = vmatprep.subr.mxu0 0.0
    %458 = vmatpush2.msra.mxu0 0.0
    %459 = vmatprep.subr.mxu0 0.0
    %460 = vmatpush2.msra.mxu0 0.0
    %461 = vmatprep.subr.mxu0 0.0
    %462 = vmatpush2.msra.mxu0 0.0
    %463 = vmatprep.subr.mxu0 0.0
    %464 = vmatpush2.msra.mxu0 0.0
    %465 = vmatprep.subr.mxu0 0.0
    %466 = vmatpush2.msra.mxu0 0.0
    %467 = vmatprep.subr.mxu0 0.0
    %468 = vmatpush2.msra.mxu0 0.0
    %469 = vmatprep.subr.mxu0 0.0
    %470 = vmatpush2.msra.mxu0 0.0
    %471 = vmatprep.subr.mxu0 0.0
    %472 = vmatpush2.msra.mxu0 0.0
    %473 = vmatprep.subr.mxu0 0.0
    %474 = vmatpush2.msra.mxu0 0.0
    %475 = vmatprep.subr.mxu0 0.0
    %476 = vmatpush2.msra.mxu0 0.0
    %477 = vmatprep.subr.mxu0 0.0
    %478 = vmatpush2.msra.mxu0 0.0
    %479 = vmatprep.subr.mxu0 0.0
    %480 = vmatpush2.msra.mxu0 0.0
    %481 = vmatprep.subr.mxu0 0.0
    %482 = vmatpush2.msra.mxu0 0.0
    %483 = vmatprep.subr.mxu0 0.0
    %484 = vmatpush2.msra.mxu0 0.0
    %485 = vmatprep.subr.mxu0 0.0
    %486 = vmatpush2.msra.mxu0 0.0
    %487 = vmatprep.mubr.f32.mxu0 0.0
    %488 = vmatmul.mubr.f32.gmra.mxu0 %v388
    %v489 = vpop.f32.mrf.mxu0
    %v490 = vadd.f32 %v329, %v489
    %v491 = vpop.f32.mrf.mxu0
    %492 = vmatprep.mubr.f32.mxu0 0.0
    %493 = vmatmul.mubr.f32.gmra.mxu0 %v391
    %v494 = vpop.f32.mrf.mxu0
    %v495 = vadd.f32 %v334, %v494
    %v496 = vpop.f32.mrf.mxu0
    %497 = vmatprep.mubr.f32.mxu0 0.0
    %498 = vmatmul.mubr.f32.gmra.mxu0 %v394
    %v499 = vpop.f32.mrf.mxu0
    %v500 = vadd.f32 %v339, %v499
    %v501 = vpop.f32.mrf.mxu0
    %502 = vmatprep.mubr.f32.mxu0 0.0
    %503 = vmatmul.mubr.f32.gmra.mxu0 %v397
    %v504 = vpop.f32.mrf.mxu0
    %v505 = vadd.f32 %v344, %v504
    %v506 = vpop.f32.mrf.mxu0
    %507 = vmatprep.mubr.f32.mxu0 0.0
    %508 = vmatmul.mubr.f32.gmra.mxu0 %v400
    %v509 = vpop.f32.mrf.mxu0
    %v510 = vadd.f32 %v349, %v509
    %v511 = vpop.f32.mrf.mxu0
    %512 = vmatprep.mubr.f32.mxu0 0.0
    %513 = vmatmul.mubr.f32.gmra.mxu0 %v403
    %v514 = vpop.f32.mrf.mxu0
    %v515 = vadd.f32 %v354, %v514
    %v516 = vpop.f32.mrf.mxu0
    %517 = vmatprep.mubr.f32.mxu0 0.0
    %518 = vmatmul.mubr.f32.gmra.mxu0 %v406
    %v519 = vpop.f32.mrf.mxu0
    %v520 = vadd.f32 %v359, %v519
    %v521 = vpop.f32.mrf.mxu0
    %522 = vmatprep.mubr.f32.mxu0 0.0
    %523 = vmatmul.mubr.f32.gmra.mxu0 %v409
    %v524 = vpop.f32.mrf.mxu0
    %v525 = vadd.f32 %v364, %v524
    %v526 = vpop.f32.mrf.mxu0
    %527 = vmatprep.mubr.f32.mxu0 0.0
    %528 = vmatmul.mubr.f32.gmra.mxu0 %v412
    %v529 = vpop.f32.mrf.mxu0
    %v530 = vadd.f32 %v369, %v529
    %v531 = vpop.f32.mrf.mxu0
    %532 = vmatprep.mubr.f32.mxu0 0.0
    %533 = vmatmul.mubr.f32.gmra.mxu0 %v415
    %v534 = vpop.f32.mrf.mxu0
    %v535 = vadd.f32 %v374, %v534
    %v536 = vpop.f32.mrf.mxu0
    %537 = vmatprep.mubr.f32.mxu0 0.0
    %538 = vmatmul.mubr.f32.gmra.mxu0 %v418
    %v539 = vpop.f32.mrf.mxu0
    %v540 = vadd.f32 %v379, %v539
    %v541 = vpop.f32.mrf.mxu0
    %542 = vmatprep.mubr.f32.mxu0 0.0
    %543 = vmatmul.mubr.f32.gmra.mxu0 %v421
    %v544 = vpop.f32.mrf.mxu0
    %v545 = vadd.f32 %v384, %v544
    %v546 = vpop.f32.mrf.mxu0
    %547 = vdwg.mxu0
    %v548 = vld [vmem:[%s5 + $0xc8] sm:$0x1]
    %v549 = vlaneseq
    %v550 = vshrl.u32 %v549, 7
    %v551 = vsub.s32 0, %v550
    %v552 = vrot.slane %v548, %v551
    %v553 = vadd.f32 %v490, %v552
    %v554 = vadd.f32 %v495, %v552
    %v555 = vadd.f32 %v500, %v552
    %v556 = vadd.f32 %v505, %v552
    %v557 = vadd.f32 %v510, %v552
    %v558 = vadd.f32 %v515, %v552
    %v559 = vadd.f32 %v520, %v552
    %v560 = vadd.f32 %v525, %v552
    %v561 = vadd.f32 %v530, %v552
    %v562 = vadd.f32 %v535, %v552
    %v563 = vadd.f32 %v540, %v552
    %v564 = vadd.f32 %v545, %v552
    %v565 = vtanh.pop %v553
    %v566 = vtanh.pop %v554
    %v567 = vtanh.pop %v555
    %v568 = vtanh.pop %v556
    %v569 = vtanh.pop %v557
    %v570 = vtanh.pop %v558
    %v571 = vtanh.pop %v559
    %v572 = vtanh.pop %v560
    %v573 = vtanh.pop %v561
    %v574 = vtanh.pop %v562
    %v575 = vtanh.pop %v563
    %v576 = vtanh.pop %v564
    %v577 = vld [vmem:[%s5 + $0x40] sm:$0xff]
    %v578 = vld [vmem:[%s5 + $0x48] sm:$0xff]
    %v579 = vld [vmem:[%s5 + $0x50] sm:$0xff]
    %v580 = vld [vmem:[%s5 + $0x58] sm:$0xff]
    %v581 = vld [vmem:[%s5 + $0x60] sm:$0xff]
    %v582 = vld [vmem:[%s5 + $0x68] sm:$0xff]
    %v583 = vld [vmem:[%s5 + $0x70] sm:$0xff]
    %v584 = vld [vmem:[%s5 + $0x78] sm:$0xff]
    %v585 = vld [vmem:[%s5 + $0xd0] sm:$0x1]
    %v586 = vlaneseq
    %v587 = vshrl.u32 %v586, 7
    %v588 = vsub.s32 0, %v587
    %v589 = vrot.slane %v585, %v588
    %vm590 = vcmask 523264
    %v592 = vsel %vm590, %v565, 0
    %v595 = vsel %vm590, %v566, 0
    %v598 = vsel %vm590, %v567, 0
    %v601 = vsel %vm590, %v568, 0
    %v604 = vsel %vm590, %v569, 0
    %v607 = vsel %vm590, %v570, 0
    %v610 = vsel %vm590, %v571, 0
    %v613 = vsel %vm590, %v572, 0
    %v616 = vsel %vm590, %v573, 0
    %v619 = vsel %vm590, %v574, 0
    %v622 = vsel %vm590, %v575, 0
    %v625 = vsel %vm590, %v576, 0
    %627 = vmatprep.subr.mxu0 0.0
    %628 = vmatpush1.msra.mxu0 0.0
    %629 = vmatprep.subr.mxu0 0.0
    %630 = vmatpush1.msra.mxu0 0.0
    %631 = vmatprep.subr.mxu0 0.0
    %632 = vmatpush1.msra.mxu0 0.0
    %633 = vmatprep.subr.mxu0 0.0
    %634 = vmatpush1.msra.mxu0 0.0
    %635 = vmatprep.subr.mxu0 0.0
    %636 = vmatpush1.msra.mxu0 0.0
    %637 = vmatprep.subr.mxu0 0.0
    %638 = vmatpush1.msra.mxu0 0.0
    %639 = vmatprep.subr.mxu0 0.0
    %640 = vmatpush1.msra.mxu0 0.0
    %641 = vmatprep.subr.mxu0 0.0
    %642 = vmatpush1.msra.mxu0 0.0
    %643 = vmatprep.subr.mxu0 0.0
    %644 = vmatpush1.msra.mxu0 %v584
    %645 = vmatprep.subr.mxu0 0.0
    %646 = vmatpush1.msra.mxu0 %v583
    %647 = vmatprep.subr.mxu0 0.0
    %648 = vmatpush1.msra.mxu0 %v582
    %649 = vmatprep.subr.mxu0 0.0
    %650 = vmatpush1.msra.mxu0 %v581
    %651 = vmatprep.subr.mxu0 0.0
    %652 = vmatpush1.msra.mxu0 %v580
    %653 = vmatprep.subr.mxu0 0.0
    %654 = vmatpush1.msra.mxu0 %v579
    %655 = vmatprep.subr.mxu0 0.0
    %656 = vmatpush1.msra.mxu0 %v578
    %657 = vmatprep.subr.mxu0 0.0
    %658 = vmatpush1.msra.mxu0 %v577
    %659 = vmatprep.subr.mxu0 0.0
    %660 = vmatpush2.msra.mxu0 0.0
    %661 = vmatprep.subr.mxu0 0.0
    %662 = vmatpush2.msra.mxu0 0.0
    %663 = vmatprep.subr.mxu0 0.0
    %664 = vmatpush2.msra.mxu0 0.0
    %665 = vmatprep.subr.mxu0 0.0
    %666 = vmatpush2.msra.mxu0 0.0
    %667 = vmatprep.subr.mxu0 0.0
    %668 = vmatpush2.msra.mxu0 0.0
    %669 = vmatprep.subr.mxu0 0.0
    %670 = vmatpush2.msra.mxu0 0.0
    %671 = vmatprep.subr.mxu0 0.0
    %672 = vmatpush2.msra.mxu0 0.0
    %673 = vmatprep.subr.mxu0 0.0
    %674 = vmatpush2.msra.mxu0 0.0
    %675 = vmatprep.subr.mxu0 0.0
    %676 = vmatpush2.msra.mxu0 0.0
    %677 = vmatprep.subr.mxu0 0.0
    %678 = vmatpush2.msra.mxu0 0.0
    %679 = vmatprep.subr.mxu0 0.0
    %680 = vmatpush2.msra.mxu0 0.0
    %681 = vmatprep.subr.mxu0 0.0
    %682 = vmatpush2.msra.mxu0 0.0
    %683 = vmatprep.subr.mxu0 0.0
    %684 = vmatpush2.msra.mxu0 0.0
    %685 = vmatprep.subr.mxu0 0.0
    %686 = vmatpush2.msra.mxu0 0.0
    %687 = vmatprep.subr.mxu0 0.0
    %688 = vmatpush2.msra.mxu0 0.0
    %689 = vmatprep.subr.mxu0 0.0
    %690 = vmatpush2.msra.mxu0 0.0
    %691 = vmatprep.mubr.f32.mxu0 0.0
    %692 = vmatmul.mubr.f32.gmra.mxu0 %v592
    %v693 = vpop.f32.mrf.mxu0
    %v694 = vadd.f32 %v589, %v693
    %v695 = vpop.f32.mrf.mxu0
    %696 = vmatprep.mubr.f32.mxu0 0.0
    %697 = vmatmul.mubr.f32.gmra.mxu0 %v595
    %v698 = vpop.f32.mrf.mxu0
    %v699 = vadd.f32 %v589, %v698
    %v700 = vpop.f32.mrf.mxu0
    %701 = vmatprep.mubr.f32.mxu0 0.0
    %702 = vmatmul.mubr.f32.gmra.mxu0 %v598
    %v703 = vpop.f32.mrf.mxu0
    %v704 = vadd.f32 %v589, %v703
    %v705 = vpop.f32.mrf.mxu0
    %706 = vmatprep.mubr.f32.mxu0 0.0
    %707 = vmatmul.mubr.f32.gmra.mxu0 %v601
    %v708 = vpop.f32.mrf.mxu0
    %v709 = vadd.f32 %v589, %v708
    %v710 = vpop.f32.mrf.mxu0
    %711 = vmatprep.mubr.f32.mxu0 0.0
    %712 = vmatmul.mubr.f32.gmra.mxu0 %v604
    %v713 = vpop.f32.mrf.mxu0
    %v714 = vadd.f32 %v589, %v713
    %v715 = vpop.f32.mrf.mxu0
    %716 = vmatprep.mubr.f32.mxu0 0.0
    %717 = vmatmul.mubr.f32.gmra.mxu0 %v607
    %v718 = vpop.f32.mrf.mxu0
    %v719 = vadd.f32 %v589, %v718
    %v720 = vpop.f32.mrf.mxu0
    %721 = vmatprep.mubr.f32.mxu0 0.0
    %722 = vmatmul.mubr.f32.gmra.mxu0 %v610
    %v723 = vpop.f32.mrf.mxu0
    %v724 = vadd.f32 %v589, %v723
    %v725 = vpop.f32.mrf.mxu0
    %726 = vmatprep.mubr.f32.mxu0 0.0
    %727 = vmatmul.mubr.f32.gmra.mxu0 %v613
    %v728 = vpop.f32.mrf.mxu0
    %v729 = vadd.f32 %v589, %v728
    %v730 = vpop.f32.mrf.mxu0
    %731 = vmatprep.mubr.f32.mxu0 0.0
    %732 = vmatmul.mubr.f32.gmra.mxu0 %v616
    %v733 = vpop.f32.mrf.mxu0
    %v734 = vadd.f32 %v589, %v733
    %v735 = vpop.f32.mrf.mxu0
    %736 = vmatprep.mubr.f32.mxu0 0.0
    %737 = vmatmul.mubr.f32.gmra.mxu0 %v619
    %v738 = vpop.f32.mrf.mxu0
    %v739 = vadd.f32 %v589, %v738
    %v740 = vpop.f32.mrf.mxu0
    %741 = vmatprep.mubr.f32.mxu0 0.0
    %742 = vmatmul.mubr.f32.gmra.mxu0 %v622
    %v743 = vpop.f32.mrf.mxu0
    %v744 = vadd.f32 %v589, %v743
    %v745 = vpop.f32.mrf.mxu0
    %746 = vmatprep.mubr.f32.mxu0 0.0
    %747 = vmatmul.mubr.f32.gmra.mxu0 %v625
    %v748 = vpop.f32.mrf.mxu0
    %v749 = vadd.f32 %v589, %v748
    %v750 = vpop.f32.mrf.mxu0
    %751 = vdwg.mxu0
    %v752 = vtanh.pop %v694
    %v753 = vtanh.pop %v699
    %v754 = vtanh.pop %v704
    %v755 = vtanh.pop %v709
    %v756 = vtanh.pop %v714
    %v757 = vtanh.pop %v719
    %v758 = vtanh.pop %v724
    %v759 = vtanh.pop %v729
    %v760 = vtanh.pop %v734
    %v761 = vtanh.pop %v739
    %v762 = vtanh.pop %v744
    %v763 = vtanh.pop %v749
    %v764 = vld [vmem:[%s2] sm:$0xff]
    %v765 = vld [vmem:[%s2 + $0x8] sm:$0xff]
    %v766 = vld [vmem:[%s2 + $0x10] sm:$0xff]
    %v767 = vld [vmem:[%s2 + $0x18] sm:$0xff]
    %v768 = vld [vmem:[%s2 + $0x20] sm:$0xff]
    %v769 = vld [vmem:[%s2 + $0x28] sm:$0xff]
    %v770 = vld [vmem:[%s2 + $0x30] sm:$0xff]
    %v771 = vld [vmem:[%s2 + $0x38] sm:$0xff]
    %v772 = vld [vmem:[%s2 + $0x40] sm:$0xff]
    %v773 = vld [vmem:[%s2 + $0x48] sm:$0xff]
    %v774 = vld [vmem:[%s2 + $0x50] sm:$0xff]
    %v775 = vld [vmem:[%s2 + $0x58] sm:$0xff]
    %v776 = vld [vmem:[%s5 + $0xc0] sm:$0xff]
    %vm777 = vcmask 64512
    %v779 = vsel %vm777, %v764, 0
    %v782 = vsel %vm777, %v765, 0
    %v785 = vsel %vm777, %v766, 0
    %v788 = vsel %vm777, %v767, 0
    %v791 = vsel %vm777, %v768, 0
    %v794 = vsel %vm777, %v769, 0
    %v797 = vsel %vm777, %v770, 0
    %v800 = vsel %vm777, %v771, 0
    %v803 = vsel %vm777, %v772, 0
    %v806 = vsel %vm777, %v773, 0
    %v809 = vsel %vm777, %v774, 0
    %v812 = vsel %vm777, %v775, 0
    %814 = vmatprep.subr.mxu0 0.0
    %815 = vmatpush1.msra.mxu0 0.0
    %816 = vmatprep.subr.mxu0 0.0
    %817 = vmatpush1.msra.mxu0 0.0
    %818 = vmatprep.subr.mxu0 0.0
    %819 = vmatpush1.msra.mxu0 0.0
    %820 = vmatprep.subr.mxu0 0.0
    %821 = vmatpush1.msra.mxu0 0.0
    %822 = vmatprep.subr.mxu0 0.0
    %823 = vmatpush1.msra.mxu0 0.0
    %824 = vmatprep.subr.mxu0 0.0
    %825 = vmatpush1.msra.mxu0 0.0
    %826 = vmatprep.subr.mxu0 0.0
    %827 = vmatpush1.msra.mxu0 0.0
    %828 = vmatprep.subr.mxu0 0.0
    %829 = vmatpush1.msra.mxu0 0.0
    %830 = vmatprep.subr.mxu0 0.0
    %831 = vmatpush1.msra.mxu0 0.0
    %832 = vmatprep.subr.mxu0 0.0
    %833 = vmatpush1.msra.mxu0 0.0
    %834 = vmatprep.subr.mxu0 0.0
    %835 = vmatpush1.msra.mxu0 0.0
    %836 = vmatprep.subr.mxu0 0.0
    %837 = vmatpush1.msra.mxu0 0.0
    %838 = vmatprep.subr.mxu0 0.0
    %839 = vmatpush1.msra.mxu0 0.0
    %840 = vmatprep.subr.mxu0 0.0
    %841 = vmatpush1.msra.mxu0 0.0
    %842 = vmatprep.subr.mxu0 0.0
    %843 = vmatpush1.msra.mxu0 0.0
    %844 = vmatprep.subr.mxu0 0.0
    %845 = vmatpush1.msra.mxu0 %v776
    %846 = vmatprep.subr.mxu0 0.0
    %847 = vmatpush2.msra.mxu0 0.0
    %848 = vmatprep.subr.mxu0 0.0
    %849 = vmatpush2.msra.mxu0 0.0
    %850 = vmatprep.subr.mxu0 0.0
    %851 = vmatpush2.msra.mxu0 0.0
    %852 = vmatprep.subr.mxu0 0.0
    %853 = vmatpush2.msra.mxu0 0.0
    %854 = vmatprep.subr.mxu0 0.0
    %855 = vmatpush2.msra.mxu0 0.0
    %856 = vmatprep.subr.mxu0 0.0
    %857 = vmatpush2.msra.mxu0 0.0
    %858 = vmatprep.subr.mxu0 0.0
    %859 = vmatpush2.msra.mxu0 0.0
    %860 = vmatprep.subr.mxu0 0.0
    %861 = vmatpush2.msra.mxu0 0.0
    %862 = vmatprep.subr.mxu0 0.0
    %863 = vmatpush2.msra.mxu0 0.0
    %864 = vmatprep.subr.mxu0 0.0
    %865 = vmatpush2.msra.mxu0 0.0
    %866 = vmatprep.subr.mxu0 0.0
    %867 = vmatpush2.msra.mxu0 0.0
    %868 = vmatprep.subr.mxu0 0.0
    %869 = vmatpush2.msra.mxu0 0.0
    %870 = vmatprep.subr.mxu0 0.0
    %871 = vmatpush2.msra.mxu0 0.0
    %872 = vmatprep.subr.mxu0 0.0
    %873 = vmatpush2.msra.mxu0 0.0
    %874 = vmatprep.subr.mxu0 0.0
    %875 = vmatpush2.msra.mxu0 0.0
    %876 = vmatprep.subr.mxu0 0.0
    %877 = vmatpush2.msra.mxu0 0.0
    %878 = vmatprep.mubr.f32.mxu0 0.0
    %879 = vmatmul.mubr.f32.gmra.mxu0 %v779
    %v880 = vpop.f32.mrf.mxu0
    %v881 = vadd.f32 0.0, %v880
    %v882 = vpop.f32.mrf.mxu0
    %883 = vmatprep.mubr.f32.mxu0 0.0
    %884 = vmatmul.mubr.f32.gmra.mxu0 %v782
    %v885 = vpop.f32.mrf.mxu0
    %v886 = vadd.f32 0.0, %v885
    %v887 = vpop.f32.mrf.mxu0
    %888 = vmatprep.mubr.f32.mxu0 0.0
    %889 = vmatmul.mubr.f32.gmra.mxu0 %v785
    %v890 = vpop.f32.mrf.mxu0
    %v891 = vadd.f32 0.0, %v890
    %v892 = vpop.f32.mrf.mxu0
    %893 = vmatprep.mubr.f32.mxu0 0.0
    %894 = vmatmul.mubr.f32.gmra.mxu0 %v788
    %v895 = vpop.f32.mrf.mxu0
    %v896 = vadd.f32 0.0, %v895
    %v897 = vpop.f32.mrf.mxu0
    %898 = vmatprep.mubr.f32.mxu0 0.0
    %899 = vmatmul.mubr.f32.gmra.mxu0 %v791
    %v900 = vpop.f32.mrf.mxu0
    %v901 = vadd.f32 0.0, %v900
    %v902 = vpop.f32.mrf.mxu0
    %903 = vmatprep.mubr.f32.mxu0 0.0
    %904 = vmatmul.mubr.f32.gmra.mxu0 %v794
    %v905 = vpop.f32.mrf.mxu0
    %v906 = vadd.f32 0.0, %v905
    %v907 = vpop.f32.mrf.mxu0
    %908 = vmatprep.mubr.f32.mxu0 0.0
    %909 = vmatmul.mubr.f32.gmra.mxu0 %v797
    %v910 = vpop.f32.mrf.mxu0
    %v911 = vadd.f32 0.0, %v910
    %v912 = vpop.f32.mrf.mxu0
    %913 = vmatprep.mubr.f32.mxu0 0.0
    %914 = vmatmul.mubr.f32.gmra.mxu0 %v800
    %v915 = vpop.f32.mrf.mxu0
    %v916 = vadd.f32 0.0, %v915
    %v917 = vpop.f32.mrf.mxu0
    %918 = vmatprep.mubr.f32.mxu0 0.0
    %919 = vmatmul.mubr.f32.gmra.mxu0 %v803
    %v920 = vpop.f32.mrf.mxu0
    %v921 = vadd.f32 0.0, %v920
    %v922 = vpop.f32.mrf.mxu0
    %923 = vmatprep.mubr.f32.mxu0 0.0
    %924 = vmatmul.mubr.f32.gmra.mxu0 %v806
    %v925 = vpop.f32.mrf.mxu0
    %v926 = vadd.f32 0.0, %v925
    %v927 = vpop.f32.mrf.mxu0
    %928 = vmatprep.mubr.f32.mxu0 0.0
    %929 = vmatmul.mubr.f32.gmra.mxu0 %v809
    %v930 = vpop.f32.mrf.mxu0
    %v931 = vadd.f32 0.0, %v930
    %v932 = vpop.f32.mrf.mxu0
    %933 = vmatprep.mubr.f32.mxu0 0.0
    %934 = vmatmul.mubr.f32.gmra.mxu0 %v812
    %v935 = vpop.f32.mrf.mxu0
    %v936 = vadd.f32 0.0, %v935
    %v937 = vpop.f32.mrf.mxu0
    %938 = vdwg.mxu0
    %v939 = vmul.f32 %v752, %v881
    %v940 = vmul.f32 %v753, %v886
    %v941 = vmul.f32 %v754, %v891
    %v942 = vmul.f32 %v755, %v896
    %v943 = vmul.f32 %v756, %v901
    %v944 = vmul.f32 %v757, %v906
    %v945 = vmul.f32 %v758, %v911
    %v946 = vmul.f32 %v759, %v916
    %v947 = vmul.f32 %v760, %v921
    %v948 = vmul.f32 %v761, %v926
    %v949 = vmul.f32 %v762, %v931
    %v950 = vmul.f32 %v763, %v936
    %v951 = vld [vmem:[%s5 + $0x80] sm:$0xff]
    %v952 = vld [vmem:[%s5 + $0x88] sm:$0xff]
    %v953 = vld [vmem:[%s5 + $0x90] sm:$0xff]
    %v954 = vld [vmem:[%s5 + $0x98] sm:$0xff]
    %v955 = vld [vmem:[%s5 + $0xa0] sm:$0xff]
    %v956 = vld [vmem:[%s5 + $0xa8] sm:$0xff]
    %v957 = vld [vmem:[%s5 + $0xb0] sm:$0xff]
    %v958 = vld [vmem:[%s5 + $0xb8] sm:$0xff]
    %v960 = vsel %vm590, %v939, 0
    %v963 = vsel %vm590, %v940, 0
    %v966 = vsel %vm590, %v941, 0
    %v969 = vsel %vm590, %v942, 0
    %v972 = vsel %vm590, %v943, 0
    %v975 = vsel %vm590, %v944, 0
    %v978 = vsel %vm590, %v945, 0
    %v981 = vsel %vm590, %v946, 0
    %v984 = vsel %vm590, %v947, 0
    %v987 = vsel %vm590, %v948, 0
    %v990 = vsel %vm590, %v949, 0
    %v993 = vsel %vm590, %v950, 0
    %995 = vmatprep.subr.mxu0 0.0
    %996 = vmatpush1.msra.mxu0 0.0
    %997 = vmatprep.subr.mxu0 0.0
    %998 = vmatpush1.msra.mxu0 0.0
    %999 = vmatprep.subr.mxu0 0.0
    %1000 = vmatpush1.msra.mxu0 0.0
    %1001 = vmatprep.subr.mxu0 0.0
    %1002 = vmatpush1.msra.mxu0 0.0
    %1003 = vmatprep.subr.mxu0 0.0
    %1004 = vmatpush1.msra.mxu0 0.0
    %1005 = vmatprep.subr.mxu0 0.0
    %1006 = vmatpush1.msra.mxu0 0.0
    %1007 = vmatprep.subr.mxu0 0.0
    %1008 = vmatpush1.msra.mxu0 0.0
    %1009 = vmatprep.subr.mxu0 0.0
    %1010 = vmatpush1.msra.mxu0 0.0
    %1011 = vmatprep.subr.mxu0 0.0
    %1012 = vmatpush1.msra.mxu0 %v958
    %1013 = vmatprep.subr.mxu0 0.0
    %1014 = vmatpush1.msra.mxu0 %v957
    %1015 = vmatprep.subr.mxu0 0.0
    %1016 = vmatpush1.msra.mxu0 %v956
    %1017 = vmatprep.subr.mxu0 0.0
    %1018 = vmatpush1.msra.mxu0 %v955
    %1019 = vmatprep.subr.mxu0 0.0
    %1020 = vmatpush1.msra.mxu0 %v954
    %1021 = vmatprep.subr.mxu0 0.0
    %1022 = vmatpush1.msra.mxu0 %v953
    %1023 = vmatprep.subr.mxu0 0.0
    %1024 = vmatpush1.msra.mxu0 %v952
    %1025 = vmatprep.subr.mxu0 0.0
    %1026 = vmatpush1.msra.mxu0 %v951
    %1027 = vmatprep.subr.mxu0 0.0
    %1028 = vmatpush2.msra.mxu0 0.0
    %1029 = vmatprep.subr.mxu0 0.0
    %1030 = vmatpush2.msra.mxu0 0.0
    %1031 = vmatprep.subr.mxu0 0.0
    %1032 = vmatpush2.msra.mxu0 0.0
    %1033 = vmatprep.subr.mxu0 0.0
    %1034 = vmatpush2.msra.mxu0 0.0
    %1035 = vmatprep.subr.mxu0 0.0
    %1036 = vmatpush2.msra.mxu0 0.0
    %1037 = vmatprep.subr.mxu0 0.0
    %1038 = vmatpush2.msra.mxu0 0.0
    %1039 = vmatprep.subr.mxu0 0.0
    %1040 = vmatpush2.msra.mxu0 0.0
    %1041 = vmatprep.subr.mxu0 0.0
    %1042 = vmatpush2.msra.mxu0 0.0
    %1043 = vmatprep.subr.mxu0 0.0
    %1044 = vmatpush2.msra.mxu0 0.0
    %1045 = vmatprep.subr.mxu0 0.0
    %1046 = vmatpush2.msra.mxu0 0.0
    %1047 = vmatprep.subr.mxu0 0.0
    %1048 = vmatpush2.msra.mxu0 0.0
    %1049 = vmatprep.subr.mxu0 0.0
    %1050 = vmatpush2.msra.mxu0 0.0
    %1051 = vmatprep.subr.mxu0 0.0
    %1052 = vmatpush2.msra.mxu0 0.0
    %1053 = vmatprep.subr.mxu0 0.0
    %1054 = vmatpush2.msra.mxu0 0.0
    %1055 = vmatprep.subr.mxu0 0.0
    %1056 = vmatpush2.msra.mxu0 0.0
    %1057 = vmatprep.subr.mxu0 0.0
    %1058 = vmatpush2.msra.mxu0 0.0
    %1059 = vmatprep.mubr.f32.mxu0 0.0
    %1060 = vmatmul.mubr.f32.gmra.mxu0 %v960
    %v1061 = vpop.f32.mrf.mxu0
    %v1062 = vadd.f32 0.0, %v1061
    %v1063 = vpop.f32.mrf.mxu0
    %1064 = vmatprep.mubr.f32.mxu0 0.0
    %1065 = vmatmul.mubr.f32.gmra.mxu0 %v963
    %v1066 = vpop.f32.mrf.mxu0
    %v1067 = vadd.f32 0.0, %v1066
    %v1068 = vpop.f32.mrf.mxu0
    %1069 = vmatprep.mubr.f32.mxu0 0.0
    %1070 = vmatmul.mubr.f32.gmra.mxu0 %v966
    %v1071 = vpop.f32.mrf.mxu0
    %v1072 = vadd.f32 0.0, %v1071
    %v1073 = vpop.f32.mrf.mxu0
    %1074 = vmatprep.mubr.f32.mxu0 0.0
    %1075 = vmatmul.mubr.f32.gmra.mxu0 %v969
    %v1076 = vpop.f32.mrf.mxu0
    %v1077 = vadd.f32 0.0, %v1076
    %v1078 = vpop.f32.mrf.mxu0
    %1079 = vmatprep.mubr.f32.mxu0 0.0
    %1080 = vmatmul.mubr.f32.gmra.mxu0 %v972
    %v1081 = vpop.f32.mrf.mxu0
    %v1082 = vadd.f32 0.0, %v1081
    %v1083 = vpop.f32.mrf.mxu0
    %1084 = vmatprep.mubr.f32.mxu0 0.0
    %1085 = vmatmul.mubr.f32.gmra.mxu0 %v975
    %v1086 = vpop.f32.mrf.mxu0
    %v1087 = vadd.f32 0.0, %v1086
    %v1088 = vpop.f32.mrf.mxu0
    %1089 = vmatprep.mubr.f32.mxu0 0.0
    %1090 = vmatmul.mubr.f32.gmra.mxu0 %v978
    %v1091 = vpop.f32.mrf.mxu0
    %v1092 = vadd.f32 0.0, %v1091
    %v1093 = vpop.f32.mrf.mxu0
    %1094 = vmatprep.mubr.f32.mxu0 0.0
    %1095 = vmatmul.mubr.f32.gmra.mxu0 %v981
    %v1096 = vpop.f32.mrf.mxu0
    %v1097 = vadd.f32 0.0, %v1096
    %v1098 = vpop.f32.mrf.mxu0
    %1099 = vmatprep.mubr.f32.mxu0 0.0
    %1100 = vmatmul.mubr.f32.gmra.mxu0 %v984
    %v1101 = vpop.f32.mrf.mxu0
    %v1102 = vadd.f32 0.0, %v1101
    %v1103 = vpop.f32.mrf.mxu0
    %1104 = vmatprep.mubr.f32.mxu0 0.0
    %1105 = vmatmul.mubr.f32.gmra.mxu0 %v987
    %v1106 = vpop.f32.mrf.mxu0
    %v1107 = vadd.f32 0.0, %v1106
    %v1108 = vpop.f32.mrf.mxu0
    %1109 = vmatprep.mubr.f32.mxu0 0.0
    %1110 = vmatmul.mubr.f32.gmra.mxu0 %v990
    %v1111 = vpop.f32.mrf.mxu0
    %v1112 = vadd.f32 0.0, %v1111
    %v1113 = vpop.f32.mrf.mxu0
    %1114 = vmatprep.mubr.f32.mxu0 0.0
    %1115 = vmatmul.mubr.f32.gmra.mxu0 %v993
    %v1116 = vpop.f32.mrf.mxu0
    %v1117 = vadd.f32 0.0, %v1116
    %v1118 = vpop.f32.mrf.mxu0
    %1119 = vdwg.mxu0
    %v1120 = vld [vmem:[%s4] sm:$0xff]
    %v1121 = vld [vmem:[%s4 + $0x8] sm:$0xff]
    %vm1122 = vcmask 785408
    %v1124 = vsel %vm1122, %v1120, 0
    %v1127 = vsel %vm1122, %v1121, 0
    %1129 = vmatprep.subr.mxu0 0.0
    %1130 = vmatpush1.msra.mxu0 0.0
    %1131 = vmatprep.subr.mxu0 0.0
    %1132 = vmatpush1.msra.mxu0 0.0
    %1133 = vmatprep.subr.mxu0 0.0
    %1134 = vmatpush1.msra.mxu0 0.0
    %1135 = vmatprep.subr.mxu0 0.0
    %1136 = vmatpush1.msra.mxu0 0.0
    %1137 = vmatprep.subr.mxu0 0.0
    %1138 = vmatpush1.msra.mxu0 %v1117
    %1139 = vmatprep.subr.mxu0 0.0
    %1140 = vmatpush1.msra.mxu0 %v1112
    %1141 = vmatprep.subr.mxu0 0.0
    %1142 = vmatpush1.msra.mxu0 %v1107
    %1143 = vmatprep.subr.mxu0 0.0
    %1144 = vmatpush1.msra.mxu0 %v1102
    %1145 = vmatprep.subr.mxu0 0.0
    %1146 = vmatpush1.msra.mxu0 %v1097
    %1147 = vmatprep.subr.mxu0 0.0
    %1148 = vmatpush1.msra.mxu0 %v1092
    %1149 = vmatprep.subr.mxu0 0.0
    %1150 = vmatpush1.msra.mxu0 %v1087
    %1151 = vmatprep.subr.mxu0 0.0
    %1152 = vmatpush1.msra.mxu0 %v1082
    %1153 = vmatprep.subr.mxu0 0.0
    %1154 = vmatpush1.msra.mxu0 %v1077
    %1155 = vmatprep.subr.mxu0 0.0
    %1156 = vmatpush1.msra.mxu0 %v1072
    %1157 = vmatprep.subr.mxu0 0.0
    %1158 = vmatpush1.msra.mxu0 %v1067
    %1159 = vmatprep.subr.mxu0 0.0
    %1160 = vmatpush1.msra.mxu0 %v1062
    %1161 = vmatprep.subr.mxu0 0.0
    %1162 = vmatpush2.msra.mxu0 0.0
    %1163 = vmatprep.subr.mxu0 0.0
    %1164 = vmatpush2.msra.mxu0 0.0
    %1165 = vmatprep.subr.mxu0 0.0
    %1166 = vmatpush2.msra.mxu0 0.0
    %1167 = vmatprep.subr.mxu0 0.0
    %1168 = vmatpush2.msra.mxu0 0.0
    %1169 = vmatprep.subr.mxu0 0.0
    %1170 = vmatpush2.msra.mxu0 0.0
    %1171 = vmatprep.subr.mxu0 0.0
    %1172 = vmatpush2.msra.mxu0 0.0
    %1173 = vmatprep.subr.mxu0 0.0
    %1174 = vmatpush2.msra.mxu0 0.0
    %1175 = vmatprep.subr.mxu0 0.0
    %1176 = vmatpush2.msra.mxu0 0.0
    %1177 = vmatprep.subr.mxu0 0.0
    %1178 = vmatpush2.msra.mxu0 0.0
    %1179 = vmatprep.subr.mxu0 0.0
    %1180 = vmatpush2.msra.mxu0 0.0
    %1181 = vmatprep.subr.mxu0 0.0
    %1182 = vmatpush2.msra.mxu0 0.0
    %1183 = vmatprep.subr.mxu0 0.0
    %1184 = vmatpush2.msra.mxu0 0.0
    %1185 = vmatprep.subr.mxu0 0.0
    %1186 = vmatpush2.msra.mxu0 0.0
    %1187 = vmatprep.subr.mxu0 0.0
    %1188 = vmatpush2.msra.mxu0 0.0
    %1189 = vmatprep.subr.mxu0 0.0
    %1190 = vmatpush2.msra.mxu0 0.0
    %1191 = vmatprep.subr.mxu0 0.0
    %1192 = vmatpush2.msra.mxu0 0.0
    %1193 = vmatprep.mubr.f32.mxu0 0.0
    %1194 = vmatmul.mubr.f32.gmra.mxu0 %v1124
    %v1195 = vpop.f32.mrf.mxu0
    %v1196 = vadd.f32 0.0, %v1195
    %v1197 = vpop.f32.mrf.mxu0
    %1198 = vmatprep.mubr.f32.mxu0 0.0
    %1199 = vmatmul.mubr.f32.gmra.mxu0 %v1127
    %v1200 = vpop.f32.mrf.mxu0
    %v1201 = vadd.f32 0.0, %v1200
    %v1202 = vpop.f32.mrf.mxu0
    %1203 = vdwg.mxu0
    %v1204 = vld [vmem:[%s6] sm:$0xff]
    %v1205 = vld [vmem:[%s6 + $0x8] sm:$0xff]
    %v1206 = vld [vmem:[%s6 + $0x10] sm:$0xff]
    %s1207 = scalar_lea.vmem %s6, 24
    %v1208 = vld [vmem:[%s1207] ss:$8 sm:$0x7]
    %v1210 = vlaneseq
    %v1211 = vshrl.u32 %v1210, 7
    %v1212 = vsub.s32 0, %v1211
    %v1213 = vrot.slane %v1208, %v1212
    %v1214 = vlaneseq
    %v1215 = vshrl.u32 %v1214, 7
    %v1216 = vsub.s32 1, %v1215
    %v1217 = vrot.slane %v1208, %v1216
    %v1218 = vlaneseq
    %v1219 = vshrl.u32 %v1218, 7
    %v1220 = vsub.s32 2, %v1219
    %v1221 = vrot.slane %v1208, %v1220
    %v1226 = vsel %vm777, %v32, 0
    %v1229 = vsel %vm777, %v33, 0
    %1231 = vmatprep.subr.mxu0 0.0
    %1232 = vmatpush1.msra.mxu0 0.0
    %1233 = vmatprep.subr.mxu0 0.0
    %1234 = vmatpush1.msra.mxu0 0.0
    %1235 = vmatprep.subr.mxu0 0.0
    %1236 = vmatpush1.msra.mxu0 0.0
    %1237 = vmatprep.subr.mxu0 0.0
    %1238 = vmatpush1.msra.mxu0 0.0
    %1239 = vmatprep.subr.mxu0 0.0
    %1240 = vmatpush1.msra.mxu0 0.0
    %1241 = vmatprep.subr.mxu0 0.0
    %1242 = vmatpush1.msra.mxu0 0.0
    %1243 = vmatprep.subr.mxu0 0.0
    %1244 = vmatpush1.msra.mxu0 0.0
    %1245 = vmatprep.subr.mxu0 0.0
    %1246 = vmatpush1.msra.mxu0 0.0
    %1247 = vmatprep.subr.mxu0 0.0
    %1248 = vmatpush1.msra.mxu0 0.0
    %1249 = vmatprep.subr.mxu0 0.0
    %1250 = vmatpush1.msra.mxu0 0.0
    %1251 = vmatprep.subr.mxu0 0.0
    %1252 = vmatpush1.msra.mxu0 0.0
    %1253 = vmatprep.subr.mxu0 0.0
    %1254 = vmatpush1.msra.mxu0 0.0
    %1255 = vmatprep.subr.mxu0 0.0
    %1256 = vmatpush1.msra.mxu0 0.0
    %1257 = vmatprep.subr.mxu0 0.0
    %1258 = vmatpush1.msra.mxu0 0.0
    %1259 = vmatprep.subr.mxu0 0.0
    %1260 = vmatpush1.msra.mxu0 0.0
    %1261 = vmatprep.subr.mxu0 %v1205
    %1262 = vmatpush1.msra.mxu0 %v1204
    %1263 = vmatprep.subr.mxu0 0.0
    %1264 = vmatpush2.msra.mxu0 0.0
    %1265 = vmatprep.subr.mxu0 0.0
    %1266 = vmatpush2.msra.mxu0 0.0
    %1267 = vmatprep.subr.mxu0 0.0
    %1268 = vmatpush2.msra.mxu0 0.0
    %1269 = vmatprep.subr.mxu0 0.0
    %1270 = vmatpush2.msra.mxu0 0.0
    %1271 = vmatprep.subr.mxu0 0.0
    %1272 = vmatpush2.msra.mxu0 0.0
    %1273 = vmatprep.subr.mxu0 0.0
    %1274 = vmatpush2.msra.mxu0 0.0
    %1275 = vmatprep.subr.mxu0 0.0
    %1276 = vmatpush2.msra.mxu0 0.0
    %1277 = vmatprep.subr.mxu0 0.0
    %1278 = vmatpush2.msra.mxu0 0.0
    %1279 = vmatprep.subr.mxu0 0.0
    %1280 = vmatpush2.msra.mxu0 0.0
    %1281 = vmatprep.subr.mxu0 0.0
    %1282 = vmatpush2.msra.mxu0 0.0
    %1283 = vmatprep.subr.mxu0 0.0
    %1284 = vmatpush2.msra.mxu0 0.0
    %1285 = vmatprep.subr.mxu0 0.0
    %1286 = vmatpush2.msra.mxu0 0.0
    %1287 = vmatprep.subr.mxu0 0.0
    %1288 = vmatpush2.msra.mxu0 0.0
    %1289 = vmatprep.subr.mxu0 0.0
    %1290 = vmatpush2.msra.mxu0 0.0
    %1291 = vmatprep.subr.mxu0 0.0
    %1292 = vmatpush2.msra.mxu0 0.0
    %1293 = vmatprep.subr.mxu0 0.0
    %1294 = vmatpush2.msra.mxu0 0.0
    %1295 = vmatprep.mubr.f32.mxu0 0.0
    %1296 = vmatmul.mubr.f32.gmra.mxu0 %v1226
    %v1297 = vpop.f32.mrf.mxu0
    %v1298 = vadd.f32 %v1213, %v1297
    %v1299 = vpop.f32.mrf.mxu0
    %v1300 = vadd.f32 %v1217, %v1299
    %1301 = vmatprep.mubr.f32.mxu0 0.0
    %1302 = vmatmul.mubr.f32.gmra.mxu0 %v1229
    %v1303 = vpop.f32.mrf.mxu0
    %v1304 = vadd.f32 %v1213, %v1303
    %v1305 = vpop.f32.mrf.mxu0
    %v1306 = vadd.f32 %v1217, %v1305
    %1307 = vdwg.mxu0
    %1308 = vmatprep.subr.mxu0 0.0
    %1309 = vmatpush1.msra.mxu0 0.0
    %1310 = vmatprep.subr.mxu0 0.0
    %1311 = vmatpush1.msra.mxu0 0.0
    %1312 = vmatprep.subr.mxu0 0.0
    %1313 = vmatpush1.msra.mxu0 0.0
    %1314 = vmatprep.subr.mxu0 0.0
    %1315 = vmatpush1.msra.mxu0 0.0
    %1316 = vmatprep.subr.mxu0 0.0
    %1317 = vmatpush1.msra.mxu0 0.0
    %1318 = vmatprep.subr.mxu0 0.0
    %1319 = vmatpush1.msra.mxu0 0.0
    %1320 = vmatprep.subr.mxu0 0.0
    %1321 = vmatpush1.msra.mxu0 0.0
    %1322 = vmatprep.subr.mxu0 0.0
    %1323 = vmatpush1.msra.mxu0 0.0
    %1324 = vmatprep.subr.mxu0 0.0
    %1325 = vmatpush1.msra.mxu0 0.0
    %1326 = vmatprep.subr.mxu0 0.0
    %1327 = vmatpush1.msra.mxu0 0.0
    %1328 = vmatprep.subr.mxu0 0.0
    %1329 = vmatpush1.msra.mxu0 0.0
    %1330 = vmatprep.subr.mxu0 0.0
    %1331 = vmatpush1.msra.mxu0 0.0
    %1332 = vmatprep.subr.mxu0 0.0
    %1333 = vmatpush1.msra.mxu0 0.0
    %1334 = vmatprep.subr.mxu0 0.0
    %1335 = vmatpush1.msra.mxu0 0.0
    %1336 = vmatprep.subr.mxu0 0.0
    %1337 = vmatpush1.msra.mxu0 0.0
    %1338 = vmatprep.subr.mxu0 0.0
    %1339 = vmatpush1.msra.mxu0 %v1206
    %1340 = vmatprep.subr.mxu0 0.0
    %1341 = vmatpush2.msra.mxu0 0.0
    %1342 = vmatprep.subr.mxu0 0.0
    %1343 = vmatpush2.msra.mxu0 0.0
    %1344 = vmatprep.subr.mxu0 0.0
    %1345 = vmatpush2.msra.mxu0 0.0
    %1346 = vmatprep.subr.mxu0 0.0
    %1347 = vmatpush2.msra.mxu0 0.0
    %1348 = vmatprep.subr.mxu0 0.0
    %1349 = vmatpush2.msra.mxu0 0.0
    %1350 = vmatprep.subr.mxu0 0.0
    %1351 = vmatpush2.msra.mxu0 0.0
    %1352 = vmatprep.subr.mxu0 0.0
    %1353 = vmatpush2.msra.mxu0 0.0
    %1354 = vmatprep.subr.mxu0 0.0
    %1355 = vmatpush2.msra.mxu0 0.0
    %1356 = vmatprep.subr.mxu0 0.0
    %1357 = vmatpush2.msra.mxu0 0.0
    %1358 = vmatprep.subr.mxu0 0.0
    %1359 = vmatpush2.msra.mxu0 0.0
    %1360 = vmatprep.subr.mxu0 0.0
    %1361 = vmatpush2.msra.mxu0 0.0
    %1362 = vmatprep.subr.mxu0 0.0
    %1363 = vmatpush2.msra.mxu0 0.0
    %1364 = vmatprep.subr.mxu0 0.0
    %1365 = vmatpush2.msra.mxu0 0.0
    %1366 = vmatprep.subr.mxu0 0.0
    %1367 = vmatpush2.msra.mxu0 0.0
    %1368 = vmatprep.subr.mxu0 0.0
    %1369 = vmatpush2.msra.mxu0 0.0
    %1370 = vmatprep.subr.mxu0 0.0
    %1371 = vmatpush2.msra.mxu0 0.0
    %1372 = vmatprep.mubr.f32.mxu0 0.0
    %1373 = vmatmul.mubr.f32.gmra.mxu0 %v1226
    %v1374 = vpop.f32.mrf.mxu0
    %v1375 = vadd.f32 %v1221, %v1374
    %v1376 = vpop.f32.mrf.mxu0
    %1377 = vmatprep.mubr.f32.mxu0 0.0
    %1378 = vmatmul.mubr.f32.gmra.mxu0 %v1229
    %v1379 = vpop.f32.mrf.mxu0
    %v1380 = vadd.f32 %v1221, %v1379
    %v1381 = vpop.f32.mrf.mxu0
    %1382 = vdwg.mxu0
    %v1383 = vld [vmem:[%s6 + $0x30] sm:$0xff]
    %v1384 = vld [vmem:[%s6 + $0x38] sm:$0xff]
    %v1385 = vld [vmem:[%s6 + $0x40] sm:$0xff]
    %v1386 = vld [vmem:[%s6 + $0x48] sm:$0xff]
    %v1387 = vld [vmem:[%s6 + $0x50] sm:$0xff]
    %v1388 = vld [vmem:[%s6 + $0x58] sm:$0xff]
    %v1389 = vld [vmem:[%s6 + $0x60] sm:$0xff]
    %v1390 = vld [vmem:[%s6 + $0x68] sm:$0xff]
    %v1391 = vld [vmem:[%s6 + $0x70] sm:$0xff]
    %v1392 = vld [vmem:[%s6 + $0x78] sm:$0xff]
    %v1393 = vld [vmem:[%s6 + $0x80] sm:$0xff]
    %v1394 = vld [vmem:[%s6 + $0x88] sm:$0xff]
    %v1396 = vsel %vm40, %v1196, 0
    %v1399 = vsel %vm40, %v1201, 0
    %1401 = vmatprep.subr.mxu0 0.0
    %1402 = vmatpush1.msra.mxu0 0.0
    %1403 = vmatprep.subr.mxu0 0.0
    %1404 = vmatpush1.msra.mxu0 0.0
    %1405 = vmatprep.subr.mxu0 0.0
    %1406 = vmatpush1.msra.mxu0 0.0
    %1407 = vmatprep.subr.mxu0 0.0
    %1408 = vmatpush1.msra.mxu0 0.0
    %1409 = vmatprep.subr.mxu0 0.0
    %1410 = vmatpush1.msra.mxu0 0.0
    %1411 = vmatprep.subr.mxu0 0.0
    %1412 = vmatpush1.msra.mxu0 0.0
    %1413 = vmatprep.subr.mxu0 0.0
    %1414 = vmatpush1.msra.mxu0 0.0
    %1415 = vmatprep.subr.mxu0 0.0
    %1416 = vmatpush1.msra.mxu0 0.0
    %1417 = vmatprep.subr.mxu0 0.0
    %1418 = vmatpush1.msra.mxu0 0.0
    %1419 = vmatprep.subr.mxu0 0.0
    %1420 = vmatpush1.msra.mxu0 0.0
    %1421 = vmatprep.subr.mxu0 0.0
    %1422 = vmatpush1.msra.mxu0 0.0
    %1423 = vmatprep.subr.mxu0 0.0
    %1424 = vmatpush1.msra.mxu0 0.0
    %1425 = vmatprep.subr.mxu0 %v1393
    %1426 = vmatpush1.msra.mxu0 %v1392
    %1427 = vmatprep.subr.mxu0 %v1390
    %1428 = vmatpush1.msra.mxu0 %v1389
    %1429 = vmatprep.subr.mxu0 %v1387
    %1430 = vmatpush1.msra.mxu0 %v1386
    %1431 = vmatprep.subr.mxu0 %v1384
    %1432 = vmatpush1.msra.mxu0 %v1383
    %1433 = vmatprep.subr.mxu0 0.0
    %1434 = vmatpush2.msra.mxu0 0.0
    %1435 = vmatprep.subr.mxu0 0.0
    %1436 = vmatpush2.msra.mxu0 0.0
    %1437 = vmatprep.subr.mxu0 0.0
    %1438 = vmatpush2.msra.mxu0 0.0
    %1439 = vmatprep.subr.mxu0 0.0
    %1440 = vmatpush2.msra.mxu0 0.0
    %1441 = vmatprep.subr.mxu0 0.0
    %1442 = vmatpush2.msra.mxu0 0.0
    %1443 = vmatprep.subr.mxu0 0.0
    %1444 = vmatpush2.msra.mxu0 0.0
    %1445 = vmatprep.subr.mxu0 0.0
    %1446 = vmatpush2.msra.mxu0 0.0
    %1447 = vmatprep.subr.mxu0 0.0
    %1448 = vmatpush2.msra.mxu0 0.0
    %1449 = vmatprep.subr.mxu0 0.0
    %1450 = vmatpush2.msra.mxu0 0.0
    %1451 = vmatprep.subr.mxu0 0.0
    %1452 = vmatpush2.msra.mxu0 0.0
    %1453 = vmatprep.subr.mxu0 0.0
    %1454 = vmatpush2.msra.mxu0 0.0
    %1455 = vmatprep.subr.mxu0 0.0
    %1456 = vmatpush2.msra.mxu0 0.0
    %1457 = vmatprep.subr.mxu0 0.0
    %1458 = vmatpush2.msra.mxu0 0.0
    %1459 = vmatprep.subr.mxu0 0.0
    %1460 = vmatpush2.msra.mxu0 0.0
    %1461 = vmatprep.subr.mxu0 0.0
    %1462 = vmatpush2.msra.mxu0 0.0
    %1463 = vmatprep.subr.mxu0 0.0
    %1464 = vmatpush2.msra.mxu0 0.0
    %1465 = vmatprep.mubr.f32.mxu0 0.0
    %1466 = vmatmul.mubr.f32.gmra.mxu0 %v1396
    %v1467 = vpop.f32.mrf.mxu0
    %v1468 = vadd.f32 0.0, %v1467
    %v1469 = vpop.f32.mrf.mxu0
    %v1470 = vadd.f32 0.0, %v1469
    %1471 = vmatprep.mubr.f32.mxu0 0.0
    %1472 = vmatmul.mubr.f32.gmra.mxu0 %v1399
    %v1473 = vpop.f32.mrf.mxu0
    %v1474 = vadd.f32 0.0, %v1473
    %v1475 = vpop.f32.mrf.mxu0
    %v1476 = vadd.f32 0.0, %v1475
    %1477 = vdwg.mxu0
    %1478 = vmatprep.subr.mxu0 0.0
    %1479 = vmatpush1.msra.mxu0 0.0
    %1480 = vmatprep.subr.mxu0 0.0
    %1481 = vmatpush1.msra.mxu0 0.0
    %1482 = vmatprep.subr.mxu0 0.0
    %1483 = vmatpush1.msra.mxu0 0.0
    %1484 = vmatprep.subr.mxu0 0.0
    %1485 = vmatpush1.msra.mxu0 0.0
    %1486 = vmatprep.subr.mxu0 0.0
    %1487 = vmatpush1.msra.mxu0 0.0
    %1488 = vmatprep.subr.mxu0 0.0
    %1489 = vmatpush1.msra.mxu0 0.0
    %1490 = vmatprep.subr.mxu0 0.0
    %1491 = vmatpush1.msra.mxu0 0.0
    %1492 = vmatprep.subr.mxu0 0.0
    %1493 = vmatpush1.msra.mxu0 0.0
    %1494 = vmatprep.subr.mxu0 0.0
    %1495 = vmatpush1.msra.mxu0 0.0
    %1496 = vmatprep.subr.mxu0 0.0
    %1497 = vmatpush1.msra.mxu0 0.0
    %1498 = vmatprep.subr.mxu0 0.0
    %1499 = vmatpush1.msra.mxu0 0.0
    %1500 = vmatprep.subr.mxu0 0.0
    %1501 = vmatpush1.msra.mxu0 0.0
    %1502 = vmatprep.subr.mxu0 0.0
    %1503 = vmatpush1.msra.mxu0 %v1394
    %1504 = vmatprep.subr.mxu0 0.0
    %1505 = vmatpush1.msra.mxu0 %v1391
    %1506 = vmatprep.subr.mxu0 0.0
    %1507 = vmatpush1.msra.mxu0 %v1388
    %1508 = vmatprep.subr.mxu0 0.0
    %1509 = vmatpush1.msra.mxu0 %v1385
    %1510 = vmatprep.subr.mxu0 0.0
    %1511 = vmatpush2.msra.mxu0 0.0
    %1512 = vmatprep.subr.mxu0 0.0
    %1513 = vmatpush2.msra.mxu0 0.0
    %1514 = vmatprep.subr.mxu0 0.0
    %1515 = vmatpush2.msra.mxu0 0.0
    %1516 = vmatprep.subr.mxu0 0.0
    %1517 = vmatpush2.msra.mxu0 0.0
    %1518 = vmatprep.subr.mxu0 0.0
    %1519 = vmatpush2.msra.mxu0 0.0
    %1520 = vmatprep.subr.mxu0 0.0
    %1521 = vmatpush2.msra.mxu0 0.0
    %1522 = vmatprep.subr.mxu0 0.0
    %1523 = vmatpush2.msra.mxu0 0.0
    %1524 = vmatprep.subr.mxu0 0.0
    %1525 = vmatpush2.msra.mxu0 0.0
    %1526 = vmatprep.subr.mxu0 0.0
    %1527 = vmatpush2.msra.mxu0 0.0
    %1528 = vmatprep.subr.mxu0 0.0
    %1529 = vmatpush2.msra.mxu0 0.0
    %1530 = vmatprep.subr.mxu0 0.0
    %1531 = vmatpush2.msra.mxu0 0.0
    %1532 = vmatprep.subr.mxu0 0.0
    %1533 = vmatpush2.msra.mxu0 0.0
    %1534 = vmatprep.subr.mxu0 0.0
    %1535 = vmatpush2.msra.mxu0 0.0
    %1536 = vmatprep.subr.mxu0 0.0
    %1537 = vmatpush2.msra.mxu0 0.0
    %1538 = vmatprep.subr.mxu0 0.0
    %1539 = vmatpush2.msra.mxu0 0.0
    %1540 = vmatprep.subr.mxu0 0.0
    %1541 = vmatpush2.msra.mxu0 0.0
    %1542 = vmatprep.mubr.f32.mxu0 0.0
    %1543 = vmatmul.mubr.f32.gmra.mxu0 %v1396
    %v1544 = vpop.f32.mrf.mxu0
    %v1545 = vadd.f32 0.0, %v1544
    %v1546 = vpop.f32.mrf.mxu0
    %1547 = vmatprep.mubr.f32.mxu0 0.0
    %1548 = vmatmul.mubr.f32.gmra.mxu0 %v1399
    %v1549 = vpop.f32.mrf.mxu0
    %v1550 = vadd.f32 0.0, %v1549
    %v1551 = vpop.f32.mrf.mxu0
    %1552 = vdwg.mxu0
    %v1553 = vadd.f32 %v1298, %v1468
    %v1554 = vadd.f32 %v1304, %v1474
    %v1555 = vxor.u32 %v1553, 2147483648
    %v1556 = vxor.u32 %v1554, 2147483648
    %v1557 = vmul.f32 %v1555, 1.442695
    %v1558 = vpow.pop %v1557
    %v1559 = vmul.f32 %v1556, 1.442695
    %v1560 = vpow.pop %v1559
    %v1561 = vadd.f32 %v1558, 1.0
    %v1562 = vadd.f32 %v1560, 1.0
    %v1563 = vrcp.pop %v1561
    %v1564 = vmul.f32 1.0, %v1563
    %v1565 = vrcp.pop %v1562
    %v1566 = vmul.f32 1.0, %v1565
    %v1567 = vadd.f32 %v1300, %v1470
    %v1568 = vadd.f32 %v1306, %v1476
    %v1569 = vxor.u32 %v1567, 2147483648
    %v1570 = vxor.u32 %v1568, 2147483648
    %v1571 = vmul.f32 %v1569, 1.442695
    %v1572 = vpow.pop %v1571
    %v1573 = vmul.f32 %v1570, 1.442695
    %v1574 = vpow.pop %v1573
    %v1575 = vadd.f32 %v1572, 1.0
    %v1576 = vadd.f32 %v1574, 1.0
    %v1577 = vrcp.pop %v1575
    %v1578 = vmul.f32 1.0, %v1577
    %v1579 = vrcp.pop %v1576
    %v1580 = vmul.f32 1.0, %v1579
    %v1581 = vmul.f32 %v1564, %v1545
    %v1582 = vmul.f32 %v1566, %v1550
    %v1583 = vadd.f32 %v1375, %v1581
    %v1584 = vadd.f32 %v1380, %v1582
    %v1585 = vtanh.pop %v1583
    %v1586 = vtanh.pop %v1584
    %v1587 = vsub.f32 1.0, %v1578
    %v1588 = vsub.f32 1.0, %v1580
    %v1589 = vmul.f32 %v1587, %v1585
    %v1590 = vmul.f32 %v1588, %v1586
    %v1591 = vmul.f32 %v1578, %v34
    %v1592 = vmul.f32 %v1580, %v35
    %v1593 = vadd.f32 %v1589, %v1591
    %v1594 = vadd.f32 %v1590, %v1592
    %v1595 = vld [vmem:[%s7] sm:$0xff]
    %v1596 = vld [vmem:[%s7 + $0x8] sm:$0xff]
    %v1597 = vld [vmem:[%s7 + $0x10] sm:$0xff]
    %v1598 = vld [vmem:[%s7 + $0x18] sm:$0xff]
    %v1599 = vld [vmem:[%s7 + $0x60] sm:$0x1]
    %v1600 = vlaneseq
    %v1601 = vshrl.u32 %v1600, 7
    %v1602 = vsub.s32 0, %v1601
    %v1603 = vrot.slane %v1599, %v1602
    %v1605 = vsel %vm40, %v1593, 0
    %v1608 = vsel %vm40, %v1594, 0
    %1610 = vmatprep.subr.mxu0 0.0
    %1611 = vmatpush1.msra.mxu0 0.0
    %1612 = vmatprep.subr.mxu0 0.0
    %1613 = vmatpush1.msra.mxu0 0.0
    %1614 = vmatprep.subr.mxu0 0.0
    %1615 = vmatpush1.msra.mxu0 0.0
    %1616 = vmatprep.subr.mxu0 0.0
    %1617 = vmatpush1.msra.mxu0 0.0
    %1618 = vmatprep.subr.mxu0 0.0
    %1619 = vmatpush1.msra.mxu0 0.0
    %1620 = vmatprep.subr.mxu0 0.0
    %1621 = vmatpush1.msra.mxu0 0.0
    %1622 = vmatprep.subr.mxu0 0.0
    %1623 = vmatpush1.msra.mxu0 0.0
    %1624 = vmatprep.subr.mxu0 0.0
    %1625 = vmatpush1.msra.mxu0 0.0
    %1626 = vmatprep.subr.mxu0 0.0
    %1627 = vmatpush1.msra.mxu0 0.0
    %1628 = vmatprep.subr.mxu0 0.0
    %1629 = vmatpush1.msra.mxu0 0.0
    %1630 = vmatprep.subr.mxu0 0.0
    %1631 = vmatpush1.msra.mxu0 0.0
    %1632 = vmatprep.subr.mxu0 0.0
    %1633 = vmatpush1.msra.mxu0 0.0
    %1634 = vmatprep.subr.mxu0 0.0
    %1635 = vmatpush1.msra.mxu0 %v1598
    %1636 = vmatprep.subr.mxu0 0.0
    %1637 = vmatpush1.msra.mxu0 %v1597
    %1638 = vmatprep.subr.mxu0 0.0
    %1639 = vmatpush1.msra.mxu0 %v1596
    %1640 = vmatprep.subr.mxu0 0.0
    %1641 = vmatpush1.msra.mxu0 %v1595
    %1642 = vmatprep.subr.mxu0 0.0
    %1643 = vmatpush2.msra.mxu0 0.0
    %1644 = vmatprep.subr.mxu0 0.0
    %1645 = vmatpush2.msra.mxu0 0.0
    %1646 = vmatprep.subr.mxu0 0.0
    %1647 = vmatpush2.msra.mxu0 0.0
    %1648 = vmatprep.subr.mxu0 0.0
    %1649 = vmatpush2.msra.mxu0 0.0
    %1650 = vmatprep.subr.mxu0 0.0
    %1651 = vmatpush2.msra.mxu0 0.0
    %1652 = vmatprep.subr.mxu0 0.0
    %1653 = vmatpush2.msra.mxu0 0.0
    %1654 = vmatprep.subr.mxu0 0.0
    %1655 = vmatpush2.msra.mxu0 0.0
    %1656 = vmatprep.subr.mxu0 0.0
    %1657 = vmatpush2.msra.mxu0 0.0
    %1658 = vmatprep.subr.mxu0 0.0
    %1659 = vmatpush2.msra.mxu0 0.0
    %1660 = vmatprep.subr.mxu0 0.0
    %1661 = vmatpush2.msra.mxu0 0.0
    %1662 = vmatprep.subr.mxu0 0.0
    %1663 = vmatpush2.msra.mxu0 0.0
    %1664 = vmatprep.subr.mxu0 0.0
    %1665 = vmatpush2.msra.mxu0 0.0
    %1666 = vmatprep.subr.mxu0 0.0
    %1667 = vmatpush2.msra.mxu0 0.0
    %1668 = vmatprep.subr.mxu0 0.0
    %1669 = vmatpush2.msra.mxu0 0.0
    %1670 = vmatprep.subr.mxu0 0.0
    %1671 = vmatpush2.msra.mxu0 0.0
    %1672 = vmatprep.subr.mxu0 0.0
    %1673 = vmatpush2.msra.mxu0 0.0
    %1674 = vmatprep.mubr.f32.mxu0 0.0
    %1675 = vmatmul.mubr.f32.gmra.mxu0 %v1605
    %v1676 = vpop.f32.mrf.mxu0
    %v1677 = vadd.f32 %v1603, %v1676
    %v1678 = vpop.f32.mrf.mxu0
    %1679 = vmatprep.mubr.f32.mxu0 0.0
    %1680 = vmatmul.mubr.f32.gmra.mxu0 %v1608
    %v1681 = vpop.f32.mrf.mxu0
    %v1682 = vadd.f32 %v1603, %v1681
    %v1683 = vpop.f32.mrf.mxu0
    %1684 = vdwg.mxu0
    %v1685 = vmax.f32 %v1677, 0.0
    %v1686 = vmax.f32 %v1682, 0.0
    %v1687 = vld [vmem:[%s7 + $0x20] sm:$0xff]
    %v1688 = vld [vmem:[%s7 + $0x28] sm:$0xff]
    %v1689 = vld [vmem:[%s7 + $0x30] sm:$0xff]
    %v1690 = vld [vmem:[%s7 + $0x38] sm:$0xff]
    %v1691 = vld [vmem:[%s7 + $0x68] sm:$0x1]
    %v1692 = vlaneseq
    %v1693 = vshrl.u32 %v1692, 7
    %v1694 = vsub.s32 0, %v1693
    %v1695 = vrot.slane %v1691, %v1694
    %v1697 = vsel %vm40, %v1685, 0
    %v1700 = vsel %vm40, %v1686, 0
    %1702 = vmatprep.subr.mxu0 0.0
    %1703 = vmatpush1.msra.mxu0 0.0
    %1704 = vmatprep.subr.mxu0 0.0
    %1705 = vmatpush1.msra.mxu0 0.0
    %1706 = vmatprep.subr.mxu0 0.0
    %1707 = vmatpush1.msra.mxu0 0.0
    %1708 = vmatprep.subr.mxu0 0.0
    %1709 = vmatpush1.msra.mxu0 0.0
    %1710 = vmatprep.subr.mxu0 0.0
    %1711 = vmatpush1.msra.mxu0 0.0
    %1712 = vmatprep.subr.mxu0 0.0
    %1713 = vmatpush1.msra.mxu0 0.0
    %1714 = vmatprep.subr.mxu0 0.0
    %1715 = vmatpush1.msra.mxu0 0.0
    %1716 = vmatprep.subr.mxu0 0.0
    %1717 = vmatpush1.msra.mxu0 0.0
    %1718 = vmatprep.subr.mxu0 0.0
    %1719 = vmatpush1.msra.mxu0 0.0
    %1720 = vmatprep.subr.mxu0 0.0
    %1721 = vmatpush1.msra.mxu0 0.0
    %1722 = vmatprep.subr.mxu0 0.0
    %1723 = vmatpush1.msra.mxu0 0.0
    %1724 = vmatprep.subr.mxu0 0.0
    %1725 = vmatpush1.msra.mxu0 0.0
    %1726 = vmatprep.subr.mxu0 0.0
    %1727 = vmatpush1.msra.mxu0 %v1690
    %1728 = vmatprep.subr.mxu0 0.0
    %1729 = vmatpush1.msra.mxu0 %v1689
    %1730 = vmatprep.subr.mxu0 0.0
    %1731 = vmatpush1.msra.mxu0 %v1688
    %1732 = vmatprep.subr.mxu0 0.0
    %1733 = vmatpush1.msra.mxu0 %v1687
    %1734 = vmatprep.subr.mxu0 0.0
    %1735 = vmatpush2.msra.mxu0 0.0
    %1736 = vmatprep.subr.mxu0 0.0
    %1737 = vmatpush2.msra.mxu0 0.0
    %1738 = vmatprep.subr.mxu0 0.0
    %1739 = vmatpush2.msra.mxu0 0.0
    %1740 = vmatprep.subr.mxu0 0.0
    %1741 = vmatpush2.msra.mxu0 0.0
    %1742 = vmatprep.subr.mxu0 0.0
    %1743 = vmatpush2.msra.mxu0 0.0
    %1744 = vmatprep.subr.mxu0 0.0
    %1745 = vmatpush2.msra.mxu0 0.0
    %1746 = vmatprep.subr.mxu0 0.0
    %1747 = vmatpush2.msra.mxu0 0.0
    %1748 = vmatprep.subr.mxu0 0.0
    %1749 = vmatpush2.msra.mxu0 0.0
    %1750 = vmatprep.subr.mxu0 0.0
    %1751 = vmatpush2.msra.mxu0 0.0
    %1752 = vmatprep.subr.mxu0 0.0
    %1753 = vmatpush2.msra.mxu0 0.0
    %1754 = vmatprep.subr.mxu0 0.0
    %1755 = vmatpush2.msra.mxu0 0.0
    %1756 = vmatprep.subr.mxu0 0.0
    %1757 = vmatpush2.msra.mxu0 0.0
    %1758 = vmatprep.subr.mxu0 0.0
    %1759 = vmatpush2.msra.mxu0 0.0
    %1760 = vmatprep.subr.mxu0 0.0
    %1761 = vmatpush2.msra.mxu0 0.0
    %1762 = vmatprep.subr.mxu0 0.0
    %1763 = vmatpush2.msra.mxu0 0.0
    %1764 = vmatprep.subr.mxu0 0.0
    %1765 = vmatpush2.msra.mxu0 0.0
    %1766 = vmatprep.mubr.f32.mxu0 0.0
    %1767 = vmatmul.mubr.f32.gmra.mxu0 %v1697
    %v1768 = vpop.f32.mrf.mxu0
    %v1769 = vadd.f32 %v1695, %v1768
    %v1770 = vpop.f32.mrf.mxu0
    %1771 = vmatprep.mubr.f32.mxu0 0.0
    %1772 = vmatmul.mubr.f32.gmra.mxu0 %v1700
    %v1773 = vpop.f32.mrf.mxu0
    %v1774 = vadd.f32 %v1695, %v1773
    %v1775 = vpop.f32.mrf.mxu0
    %1776 = vdwg.mxu0
    %v1777 = vmax.f32 %v1769, 0.0
    %v1778 = vmax.f32 %v1774, 0.0
    %v1779 = vld [vmem:[%s7 + $0x40] sm:$0xff]
    %v1780 = vld [vmem:[%s7 + $0x48] sm:$0xff]
    %v1781 = vld [vmem:[%s7 + $0x50] sm:$0xff]
    %v1782 = vld [vmem:[%s7 + $0x58] sm:$0xff]
    %v1783 = vld [vmem:[%s7 + $0x70] sm:$0x1]
    %v1784 = vlaneseq
    %v1785 = vshrl.u32 %v1784, 7
    %v1786 = vsub.s32 0, %v1785
    %v1787 = vrot.slane %v1783, %v1786
    %v1789 = vsel %vm40, %v1777, 0
    %v1792 = vsel %vm40, %v1778, 0
    %1794 = vmatprep.subr.mxu0 0.0
    %1795 = vmatpush1.msra.mxu0 0.0
    %1796 = vmatprep.subr.mxu0 0.0
    %1797 = vmatpush1.msra.mxu0 0.0
    %1798 = vmatprep.subr.mxu0 0.0
    %1799 = vmatpush1.msra.mxu0 0.0
    %1800 = vmatprep.subr.mxu0 0.0
    %1801 = vmatpush1.msra.mxu0 0.0
    %1802 = vmatprep.subr.mxu0 0.0
    %1803 = vmatpush1.msra.mxu0 0.0
    %1804 = vmatprep.subr.mxu0 0.0
    %1805 = vmatpush1.msra.mxu0 0.0
    %1806 = vmatprep.subr.mxu0 0.0
    %1807 = vmatpush1.msra.mxu0 0.0
    %1808 = vmatprep.subr.mxu0 0.0
    %1809 = vmatpush1.msra.mxu0 0.0
    %1810 = vmatprep.subr.mxu0 0.0
    %1811 = vmatpush1.msra.mxu0 0.0
    %1812 = vmatprep.subr.mxu0 0.0
    %1813 = vmatpush1.msra.mxu0 0.0
    %1814 = vmatprep.subr.mxu0 0.0
    %1815 = vmatpush1.msra.mxu0 0.0
    %1816 = vmatprep.subr.mxu0 0.0
    %1817 = vmatpush1.msra.mxu0 0.0
    %1818 = vmatprep.subr.mxu0 0.0
    %1819 = vmatpush1.msra.mxu0 %v1782
    %1820 = vmatprep.subr.mxu0 0.0
    %1821 = vmatpush1.msra.mxu0 %v1781
    %1822 = vmatprep.subr.mxu0 0.0
    %1823 = vmatpush1.msra.mxu0 %v1780
    %1824 = vmatprep.subr.mxu0 0.0
    %1825 = vmatpush1.msra.mxu0 %v1779
    %1826 = vmatprep.subr.mxu0 0.0
    %1827 = vmatpush2.msra.mxu0 0.0
    %1828 = vmatprep.subr.mxu0 0.0
    %1829 = vmatpush2.msra.mxu0 0.0
    %1830 = vmatprep.subr.mxu0 0.0
    %1831 = vmatpush2.msra.mxu0 0.0
    %1832 = vmatprep.subr.mxu0 0.0
    %1833 = vmatpush2.msra.mxu0 0.0
    %1834 = vmatprep.subr.mxu0 0.0
    %1835 = vmatpush2.msra.mxu0 0.0
    %1836 = vmatprep.subr.mxu0 0.0
    %1837 = vmatpush2.msra.mxu0 0.0
    %1838 = vmatprep.subr.mxu0 0.0
    %1839 = vmatpush2.msra.mxu0 0.0
    %1840 = vmatprep.subr.mxu0 0.0
    %1841 = vmatpush2.msra.mxu0 0.0
    %1842 = vmatprep.subr.mxu0 0.0
    %1843 = vmatpush2.msra.mxu0 0.0
    %1844 = vmatprep.subr.mxu0 0.0
    %1845 = vmatpush2.msra.mxu0 0.0
    %1846 = vmatprep.subr.mxu0 0.0
    %1847 = vmatpush2.msra.mxu0 0.0
    %1848 = vmatprep.subr.mxu0 0.0
    %1849 = vmatpush2.msra.mxu0 0.0
    %1850 = vmatprep.subr.mxu0 0.0
    %1851 = vmatpush2.msra.mxu0 0.0
    %1852 = vmatprep.subr.mxu0 0.0
    %1853 = vmatpush2.msra.mxu0 0.0
    %1854 = vmatprep.subr.mxu0 0.0
    %1855 = vmatpush2.msra.mxu0 0.0
    %1856 = vmatprep.subr.mxu0 0.0
    %1857 = vmatpush2.msra.mxu0 0.0
    %1858 = vmatprep.mubr.f32.mxu0 0.0
    %1859 = vmatmul.mubr.f32.gmra.mxu0 %v1789
    %v1860 = vpop.f32.mrf.mxu0
    %v1861 = vadd.f32 %v1787, %v1860
    %v1862 = vpop.f32.mrf.mxu0
    %1863 = vmatprep.mubr.f32.mxu0 0.0
    %1864 = vmatmul.mubr.f32.gmra.mxu0 %v1792
    %v1865 = vpop.f32.mrf.mxu0
    %v1866 = vadd.f32 %v1787, %v1865
    %v1867 = vpop.f32.mrf.mxu0
    %1868 = vdwg.mxu0
    %v1869 = vadd.f32 %v32, %v1861
    %v1870 = vadd.f32 %v33, %v1866
    %1871 = vst.msk [vmem:[%s8] sm:$0xff] %vm777, %v1869
    %1872 = vst.msk [vmem:[%s8 + $0x8] sm:$0xff] %vm777, %v1870
    %1873 = vst.msk [vmem:[#allocation2] sm:$0xff] %vm40, %v1593
    %1874 = vst.msk [vmem:[#allocation2 + $0x8] sm:$0xff] %vm40, %v1594
    // Predicated region
    $region34: #{tpu_custom_call.1} parent=1 // pred_check
      _
    $region35: #{tpu_custom_call.1} parent=1 // pred_check_branch
      %1876 = sbr.rel (0) target = $region37
    $region36: #{tpu_custom_call.1} parent=1 // pred_region
      _
    $region37: #{tpu_custom_call.1} parent=1 // pred_fallthru
      _
    // Predicated region
    $region38: #{tpu_custom_call.1} parent=1 // pred_check
      _
    $region39: #{tpu_custom_call.1} parent=1 // pred_check_branch
      %1878 = sbr.rel (0) target = $region41
    $region40: #{tpu_custom_call.1} parent=1 // pred_region
      %s1880 = ssub.s32 256, 256
      %1881 = vsyncadd [#allocation3], %s1880
      %s1882 = sshll.u32 [#allocation2], 4
      %s1883 = int_to_ptr.vmem [resolvable:$true] %s1882
      %1888 = dma.vmem_to_hbm [thread:$0]  %s1883, 256, %s9, [#allocation3], 128, 128, 8
    $region41: #{tpu_custom_call.1} parent=1 // pred_fallthru
      _
    // Predicated region
    $region42: #{tpu_custom_call.1} parent=1 // pred_check
      _
    $region43: #{tpu_custom_call.1} parent=1 // pred_check_branch
      %1890 = sbr.rel (0) target = $region45
    $region44: #{tpu_custom_call.1} parent=1 // pred_region
      _
    $region45: #{tpu_custom_call.1} parent=1 // pred_fallthru
      _
    // Predicated region
    $region46: #{tpu_custom_call.1} parent=1 // pred_check
      _
    $region47: #{tpu_custom_call.1} parent=1 // pred_check_branch
      %1892 = sbr.rel (0) target = $region49
    $region48: #{tpu_custom_call.1} parent=1 // pred_region
      %1893 = dma.done [#allocation3], 256
    $region49: #{tpu_custom_call.1} parent=1 // pred_fallthru
      _
    %1894 = vsyncpa [#allocation3], 1

</llo_original>
